<compile_context>
chip_gen: v6e
topology: v6e:2x2x1
jax: 0.10.0
libtpu: 0.0.40
codegen_flags: <defaults>
</compile_context>

<pallas_src>
import functools

import jax
import jax.numpy as jnp
from jax import lax
from jax.experimental import pallas as pl
from jax.experimental.pallas import tpu as pltpu

EMB_DIM = 32
CONTEXT_LENGTH = 8
NUM_HEADS = 6
HEAD_SIZE = EMB_DIM // NUM_HEADS      # = 5 (true head size; concat width = 30)
HEAD_PAD = 8                          # zero-padded head size (sublane aligned)
HIDDEN = 4 * EMB_DIM                  # = 128
LN_EPS = 1e-5


def _layer_norm(x, w, b, eps=LN_EPS):
    mean = jnp.mean(x, axis=-1, keepdims=True)
    var = jnp.mean((x - mean) ** 2, axis=-1, keepdims=True)
    return (x - mean) * lax.rsqrt(var + eps) * w + b


def transformer_block_kernel(
    x_ref,
    ln1_w_ref, ln1_b_ref,
    wqkv_ref, wp_ref, bp_ref,
    ln2_w_ref, ln2_b_ref,
    w1_ref, b1_ref,
    w2_ref, b2_ref,
    o_ref,
    *, seq_len, mm_dtype,
):
    T = seq_len
    H, P = NUM_HEADS, HEAD_PAD
    HP = H * P

    x = x_ref[...].astype(jnp.float32)                      # (M, D), M = bblk*T
    M, D = x.shape
    Bb = M // T

    # ---- LayerNorm 1 (whole slab, f32) ----
    xn = _layer_norm(x, ln1_w_ref[...].astype(jnp.float32),
                     ln1_b_ref[...].astype(jnp.float32))    # (M, D)

    # ---- Fused QKV projection: one lane-dense matmul (M,32)@(32,144) ----
    # Columns: [Q_h0..Q_h5 | K_h0..K_h5 | V_h0..V_h5], each head padded 5->8
    # with zero columns (bit-exact); 1/sqrt(5) folded into the Q columns.
    qkv = jnp.dot(xn.astype(mm_dtype), wqkv_ref[...],
                  preferred_element_type=jnp.float32)       # (M, 3*HP)

    # ---- Per-sequence causal attention (no (M, M) slab) ----
    row = lax.broadcasted_iota(jnp.int32, (T, T), 0)
    col = lax.broadcasted_iota(jnp.int32, (T, T), 1)
    bias = jnp.where(col <= row, 0.0, -1e30).astype(jnp.float32)   # (T, T)

    def head_slab(base, h):
        # (M, P) lane slice -> (Bb, T, P); T == sublane count, so this
        # reshape is layout-preserving.
        return qkv[:, base + h * P: base + (h + 1) * P].reshape(Bb, T, P)

    # Stack heads on the leading (batch) axis: G = H * Bb tiny (T, P) tiles.
    q_all = jnp.concatenate([head_slab(0 * HP, h) for h in range(H)], axis=0)
    k_all = jnp.concatenate([head_slab(1 * HP, h) for h in range(H)], axis=0)
    v_all = jnp.concatenate([head_slab(2 * HP, h) for h in range(H)], axis=0)

    s = jnp.einsum('gqp,gkp->gqk', q_all.astype(mm_dtype),
                   k_all.astype(mm_dtype),
                   preferred_element_type=jnp.float32)      # (G, T, T)
    s = s + bias[None]                                      # additive causal mask
    s = s - jnp.max(s, axis=-1, keepdims=True)
    p = jnp.exp(s)
    p = p * pl.reciprocal(jnp.sum(p, axis=-1, keepdims=True), approx=True)
    # TODO(synk): attention-prob dropout omitted (eval mode / identity).

    ctx = jnp.einsum('gqk,gkp->gqp', p.astype(mm_dtype),
                     v_all.astype(mm_dtype),
                     preferred_element_type=jnp.float32)    # (G, T, P)

    # Re-pack heads into lanes: (M, H*P) = (M, 48).
    ctxm = jnp.concatenate(
        [ctx[h * Bb:(h + 1) * Bb].reshape(M, P) for h in range(H)], axis=-1)

    # ---- Fused output projection: single (M,48)@(48,32) matmul ----
    attn = jnp.dot(ctxm.astype(mm_dtype), wp_ref[...],
                   preferred_element_type=jnp.float32)
    attn = attn + bp_ref[...].astype(jnp.float32)
    # TODO(synk): post-projection dropout omitted (eval mode / identity).

    x = x + attn                                            # residual 1

    # ---- LayerNorm 2 + FeedForward (whole slab) ----
    xn2 = _layer_norm(x, ln2_w_ref[...].astype(jnp.float32),
                      ln2_b_ref[...].astype(jnp.float32))
    h1 = jnp.dot(xn2.astype(mm_dtype), w1_ref[...],
                 preferred_element_type=jnp.float32) + b1_ref[...].astype(jnp.float32)
    h1 = jnp.maximum(h1, 0.0)                               # ReLU
    ff = jnp.dot(h1.astype(mm_dtype), w2_ref[...],
                 preferred_element_type=jnp.float32) + b2_ref[...].astype(jnp.float32)
    # TODO(synk): feed-forward dropout omitted (eval mode / identity).

    o_ref[...] = (x + ff).astype(o_ref.dtype)               # residual 2


def _pack_qkv(wq, wk, wv):
    """(D, H*HS) x3 -> (D, 3*H*P): per-head zero-pad 5->8, scale folded in Q."""
    D = wq.shape[0]
    scale = float(HEAD_SIZE) ** -0.5

    def pad_heads(w):
        w = w.reshape(D, NUM_HEADS, HEAD_SIZE)              # column = h*HS + p
        w = jnp.pad(w, ((0, 0), (0, 0), (0, HEAD_PAD - HEAD_SIZE)))
        return w.reshape(D, NUM_HEADS * HEAD_PAD)           # (D, H*P)

    return jnp.concatenate(
        [pad_heads(wq * scale), pad_heads(wk), pad_heads(wv)], axis=1)


def _pack_proj(wp):
    """(H*HS, D) -> (H*P, D): zero-pad each head's rows 5->8."""
    D = wp.shape[1]
    w = wp.reshape(NUM_HEADS, HEAD_SIZE, D)                 # row = h*HS + p
    w = jnp.pad(w, ((0, 0), (0, HEAD_PAD - HEAD_SIZE), (0, 0)))
    return w.reshape(NUM_HEADS * HEAD_PAD, D)               # (H*P, D)


def transformer_block(x, params, *, target_rows=512, use_bf16=False):
    B, T, D = x.shape
    assert T == CONTEXT_LENGTH and D == EMB_DIM
    mm_dtype = jnp.bfloat16 if use_bf16 else jnp.float32

    # ---- Grid: cdiv + padded tail (no divisor search) ----
    # Target ~target_rows rows per step; per-sequence attention keeps the
    # working set linear in the block, so this stays a few MB per step.
    bblk = max(1, min(B, max(1, target_rows // T)))
    # v7x has 2 TensorCores: keep at least 2 "parallel" grid steps when the
    # batch allows (harmless on v5e/v6e).
    if B > 1 and pl.cdiv(B, bblk) < 2:
        bblk = pl.cdiv(B, 2)
    n_steps = pl.cdiv(B, bblk)
    b_pad = n_steps * bblk
    if b_pad != B:
        x = jnp.concatenate(
            [x, jnp.zeros((b_pad - B, T, D), x.dtype)], axis=0)
    m_blk = bblk * T
    x2 = x.reshape(b_pad * T, D)

    # ---- Host-side weight packing (matmul weights cast to mm_dtype) ----
    wqkv = _pack_qkv(params["wq"], params["wk"], params["wv"]).astype(mm_dtype)
    wp = _pack_proj(params["wp"]).astype(mm_dtype)
    w1 = params["w1"].astype(mm_dtype)
    w2 = params["w2"].astype(mm_dtype)

    param_list = [
        params["ln1_w"], params["ln1_b"],
        wqkv, wp, params["bp"],
        params["ln2_w"], params["ln2_b"],
        w1, params["b1"],
        w2, params["b2"],
    ]

    def param_spec(a):
        return pl.BlockSpec(a.shape, lambda i, _n=a.ndim: (0,) * _n)

    out2 = pl.pallas_call(
        functools.partial(transformer_block_kernel, seq_len=T,
                          mm_dtype=mm_dtype),
        out_shape=jax.ShapeDtypeStruct((b_pad * T, D), x.dtype),
        grid=(n_steps,),
        in_specs=[pl.BlockSpec((m_blk, D), lambda i: (i, 0))]
                 + [param_spec(p) for p in param_list],
        out_specs=pl.BlockSpec((m_blk, D), lambda i: (i, 0)),
        compiler_params=pltpu.CompilerParams(
            dimension_semantics=("parallel",),
            vmem_limit_bytes=32 * 1024 * 1024,
        ),
    )(x2, *param_list)

    return out2.reshape(b_pad, T, D)[:B]


def init_params(key):
    ks = jax.random.split(key, 16)
    HS = NUM_HEADS * HEAD_SIZE  # 30
    s = 0.02
    params = {
        "ln1_w": jnp.ones((1, EMB_DIM), jnp.float32),
        "ln1_b": jnp.zeros((1, EMB_DIM), jnp.float32),
        "wq": s * jax.random.normal(ks[0], (EMB_DIM, HS), jnp.float32),
        "wk": s * jax.random.normal(ks[1], (EMB_DIM, HS), jnp.float32),
        "wv": s * jax.random.normal(ks[2], (EMB_DIM, HS), jnp.float32),
        "wp": s * jax.random.normal(ks[3], (HS, EMB_DIM), jnp.float32),
        "bp": s * jax.random.normal(ks[4], (1, EMB_DIM), jnp.float32),
        "ln2_w": jnp.ones((1, EMB_DIM), jnp.float32),
        "ln2_b": jnp.zeros((1, EMB_DIM), jnp.float32),
        "w1": s * jax.random.normal(ks[5], (EMB_DIM, HIDDEN), jnp.float32),
        "b1": s * jax.random.normal(ks[6], (1, HIDDEN), jnp.float32),
        "w2": s * jax.random.normal(ks[7], (HIDDEN, EMB_DIM), jnp.float32),
        "b2": s * jax.random.normal(ks[8], (1, EMB_DIM), jnp.float32),
    }
    return params


def reference_transformer_block(x, p):
    """Pure-JAX reference mirroring the PyTorch forward (eval mode)."""
    def ln(v, w, b):
        m = jnp.mean(v, axis=-1, keepdims=True)
        var = jnp.mean((v - m) ** 2, axis=-1, keepdims=True)
        return (v - m) / jnp.sqrt(var + LN_EPS) * w[0] + b[0]

    B, T, D = x.shape
    xn = ln(x, p["ln1_w"], p["ln1_b"])
    q = xn @ p["wq"]
    k = xn @ p["wk"]
    v = xn @ p["wv"]
    tril = jnp.tril(jnp.ones((T, T), bool))
    outs = []
    for h in range(NUM_HEADS):
        sl = slice(h * HEAD_SIZE, (h + 1) * HEAD_SIZE)
        s = (q[:, :, sl] @ jnp.swapaxes(k[:, :, sl], -1, -2)) * (HEAD_SIZE ** -0.5)
        s = jnp.where(tril, s, -jnp.inf)
        w = jax.nn.softmax(s, axis=-1)
        outs.append(w @ v[:, :, sl])
    attn = jnp.concatenate(outs, axis=-1) @ p["wp"] + p["bp"][0]
    x = x + attn
    xn2 = ln(x, p["ln2_w"], p["ln2_b"])
    ff = jnp.maximum(xn2 @ p["w1"] + p["b1"][0], 0.0) @ p["w2"] + p["b2"][0]
    return x + ff


if __name__ == "__main__":
    key = jax.random.PRNGKey(0)
    k_x, k_p = jax.random.split(key)

    B, T, D = 2, CONTEXT_LENGTH, EMB_DIM
    x = jax.random.normal(k_x, (B, T, D), jnp.float32)
    params = init_params(k_p)

    ref = reference_transformer_block(x, params)

    # f32 MXU-operand path (tight tolerance; slack only for approx vrcp and
    # op-reassociation from the fused/packed weights).
    out = jax.block_until_ready(transformer_block(x, params, use_bf16=False))
    assert out.shape == (B, T, D)
    assert jnp.allclose(out, ref, atol=1e-3, rtol=1e-3), (
        float(jnp.max(jnp.abs(out - ref))))

    # bf16 MXU-operand path (v6e/v7x recommendation); looser tolerance is
    # precision, not a bug — LN/softmax/residual math stays f32.
    out_bf16 = jax.block_until_ready(transformer_block(x, params, use_bf16=True))
    assert jnp.allclose(out_bf16, ref, atol=5e-2, rtol=5e-2), (
        float(jnp.max(jnp.abs(out_bf16 - ref))))

    print("KERNEL_OK")
</pallas_src>

<mosaic_0001>
module attributes {stable_mosaic.version = 11 : i64} {
  func.func @transformer_block_kernel(%arg0: i32, %arg1: memref<8x32xf32, #tpu.memory_space<vmem>>, %arg2: memref<1x32xf32, #tpu.memory_space<vmem>>, %arg3: memref<1x32xf32, #tpu.memory_space<vmem>>, %arg4: memref<32x144xf32, #tpu.memory_space<vmem>>, %arg5: memref<48x32xf32, #tpu.memory_space<vmem>>, %arg6: memref<1x32xf32, #tpu.memory_space<vmem>>, %arg7: memref<1x32xf32, #tpu.memory_space<vmem>>, %arg8: memref<1x32xf32, #tpu.memory_space<vmem>>, %arg9: memref<32x128xf32, #tpu.memory_space<vmem>>, %arg10: memref<1x128xf32, #tpu.memory_space<vmem>>, %arg11: memref<128x32xf32, #tpu.memory_space<vmem>>, %arg12: memref<1x32xf32, #tpu.memory_space<vmem>>, %arg13: memref<8x32xf32, #tpu.memory_space<vmem>>) attributes {dimension_semantics = [#tpu.dimension_semantics<parallel>], iteration_bounds = array<i64: 2>, scalar_prefetch = 0 : i64, scratch_operands = 0 : i64, tpu.core_type = #tpu.core_type<tc>, window_params = [{transform_indices = @transform_0, window_bounds = array<i64: 8, 32>}, {pipeline_mode = #tpu.pipeline_mode<synchronous>, transform_indices = @transform_1, window_bounds = array<i64: 1, 32>}, {pipeline_mode = #tpu.pipeline_mode<synchronous>, transform_indices = @transform_2, window_bounds = array<i64: 1, 32>}, {pipeline_mode = #tpu.pipeline_mode<synchronous>, transform_indices = @transform_3, window_bounds = array<i64: 32, 144>}, {pipeline_mode = #tpu.pipeline_mode<synchronous>, transform_indices = @transform_4, window_bounds = array<i64: 48, 32>}, {pipeline_mode = #tpu.pipeline_mode<synchronous>, transform_indices = @transform_5, window_bounds = array<i64: 1, 32>}, {pipeline_mode = #tpu.pipeline_mode<synchronous>, transform_indices = @transform_6, window_bounds = array<i64: 1, 32>}, {pipeline_mode = #tpu.pipeline_mode<synchronous>, transform_indices = @transform_7, window_bounds = array<i64: 1, 32>}, {pipeline_mode = #tpu.pipeline_mode<synchronous>, transform_indices = @transform_8, window_bounds = array<i64: 32, 128>}, {pipeline_mode = #tpu.pipeline_mode<synchronous>, transform_indices = @transform_9, window_bounds = array<i64: 1, 128>}, {pipeline_mode = #tpu.pipeline_mode<synchronous>, transform_indices = @transform_10, window_bounds = array<i64: 128, 32>}, {pipeline_mode = #tpu.pipeline_mode<synchronous>, transform_indices = @transform_11, window_bounds = array<i64: 1, 32>}, {transform_indices = @transform_12, window_bounds = array<i64: 8, 32>}]} {
    %c0 = arith.constant 0 : index
    %c0_0 = arith.constant 0 : index
    %0 = vector.load %arg1[%c0, %c0_0] : memref<8x32xf32, #tpu.memory_space<vmem>>, vector<8x32xf32>
    %c0_1 = arith.constant 0 : index
    %c0_2 = arith.constant 0 : index
    %1 = vector.load %arg2[%c0_1, %c0_2] : memref<1x32xf32, #tpu.memory_space<vmem>>, vector<1x32xf32>
    %c0_3 = arith.constant 0 : index
    %c0_4 = arith.constant 0 : index
    %2 = vector.load %arg3[%c0_3, %c0_4] : memref<1x32xf32, #tpu.memory_space<vmem>>, vector<1x32xf32>
    %cst = arith.constant dense<0.000000e+00> : vector<8xf32>
    %3 = vector.multi_reduction <add>, %0, %cst [1] : vector<8x32xf32> to vector<8xf32>
    %4 = vector.shape_cast %3 : vector<8xf32> to vector<8x1xf32>
    %cst_5 = arith.constant 3.200000e+01 : f32
    %5 = vector.broadcast %cst_5 : f32 to vector<8x1xf32>
    %6 = arith.divf %4, %5 : vector<8x1xf32>
    %7 = vector.broadcast %6 : vector<8x1xf32> to vector<8x32xf32>
    %8 = arith.subf %0, %7 : vector<8x32xf32>
    %9 = arith.mulf %8, %8 : vector<8x32xf32>
    %cst_6 = arith.constant dense<0.000000e+00> : vector<8xf32>
    %10 = vector.multi_reduction <add>, %9, %cst_6 [1] : vector<8x32xf32> to vector<8xf32>
    %11 = vector.shape_cast %10 : vector<8xf32> to vector<8x1xf32>
    %cst_7 = arith.constant 3.200000e+01 : f32
    %12 = vector.broadcast %cst_7 : f32 to vector<8x1xf32>
    %13 = arith.divf %11, %12 : vector<8x1xf32>
    %14 = vector.broadcast %6 : vector<8x1xf32> to vector<8x32xf32>
    %15 = arith.subf %0, %14 : vector<8x32xf32>
    %cst_8 = arith.constant 9.99999974E-6 : f32
    %16 = vector.broadcast %cst_8 : f32 to vector<8x1xf32>
    %17 = arith.addf %13, %16 : vector<8x1xf32>
    %18 = math.rsqrt %17 : vector<8x1xf32>
    %19 = vector.broadcast %18 : vector<8x1xf32> to vector<8x32xf32>
    %20 = arith.mulf %15, %19 : vector<8x32xf32>
    %21 = vector.broadcast %1 : vector<1x32xf32> to vector<8x32xf32>
    %22 = arith.mulf %20, %21 : vector<8x32xf32>
    %23 = vector.broadcast %2 : vector<1x32xf32> to vector<8x32xf32>
    %24 = arith.addf %22, %23 : vector<8x32xf32>
    %c0_9 = arith.constant 0 : index
    %c0_10 = arith.constant 0 : index
    %25 = vector.load %arg4[%c0_9, %c0_10] : memref<32x144xf32, #tpu.memory_space<vmem>>, vector<32x144xf32>
    %cst_11 = arith.constant dense<0.000000e+00> : vector<8x144xf32>
    %26 = tpu.matmul %24, %25, %cst_11 {dimension_numbers = #tpu.dot_dimension_numbers<[1], [0], [0], [1], [0, 0, 1, 1], [], []>} : vector<8x32xf32>, vector<32x144xf32>, vector<8x144xf32> -> vector<8x144xf32>
    %27 = tpu.iota {dimensions = array<i32: 0>} : vector<8x8xi32>
    %28 = tpu.iota {dimensions = array<i32: 1>} : vector<8x8xi32>
    %29 = arith.cmpi sle, %28, %27 : vector<8x8xi32>
    %cst_12 = arith.constant 0.000000e+00 : f32
    %cst_13 = arith.constant -1.000000e+30 : f32
    %30 = vector.broadcast %cst_12 : f32 to vector<8x8xf32>
    %31 = vector.broadcast %cst_13 : f32 to vector<8x8xf32>
    %32 = arith.select %29, %30, %31 : vector<8x8xi1>, vector<8x8xf32>
    %33 = vector.extract_strided_slice %26 {offsets = [0, 0], sizes = [8, 8], strides = [1, 1]} : vector<8x144xf32> to vector<8x8xf32>
    %34 = vector.shape_cast %33 : vector<8x8xf32> to vector<1x8x8xf32>
    %35 = vector.extract_strided_slice %26 {offsets = [0, 8], sizes = [8, 8], strides = [1, 1]} : vector<8x144xf32> to vector<8x8xf32>
    %36 = vector.shape_cast %35 : vector<8x8xf32> to vector<1x8x8xf32>
    %37 = vector.extract_strided_slice %26 {offsets = [0, 16], sizes = [8, 8], strides = [1, 1]} : vector<8x144xf32> to vector<8x8xf32>
    %38 = vector.shape_cast %37 : vector<8x8xf32> to vector<1x8x8xf32>
    %39 = vector.extract_strided_slice %26 {offsets = [0, 24], sizes = [8, 8], strides = [1, 1]} : vector<8x144xf32> to vector<8x8xf32>
    %40 = vector.shape_cast %39 : vector<8x8xf32> to vector<1x8x8xf32>
    %41 = vector.extract_strided_slice %26 {offsets = [0, 32], sizes = [8, 8], strides = [1, 1]} : vector<8x144xf32> to vector<8x8xf32>
    %42 = vector.shape_cast %41 : vector<8x8xf32> to vector<1x8x8xf32>
    %43 = vector.extract_strided_slice %26 {offsets = [0, 40], sizes = [8, 8], strides = [1, 1]} : vector<8x144xf32> to vector<8x8xf32>
    %44 = vector.shape_cast %43 : vector<8x8xf32> to vector<1x8x8xf32>
    %45 = tpu.concatenate %34, %36, %38, %40, %42, %44 in 0 : vector<1x8x8xf32>, vector<1x8x8xf32>, vector<1x8x8xf32>, vector<1x8x8xf32>, vector<1x8x8xf32>, vector<1x8x8xf32> -> vector<6x8x8xf32>
    %46 = vector.extract_strided_slice %26 {offsets = [0, 48], sizes = [8, 8], strides = [1, 1]} : vector<8x144xf32> to vector<8x8xf32>
    %47 = vector.shape_cast %46 : vector<8x8xf32> to vector<1x8x8xf32>
    %48 = vector.extract_strided_slice %26 {offsets = [0, 56], sizes = [8, 8], strides = [1, 1]} : vector<8x144xf32> to vector<8x8xf32>
    %49 = vector.shape_cast %48 : vector<8x8xf32> to vector<1x8x8xf32>
    %50 = vector.extract_strided_slice %26 {offsets = [0, 64], sizes = [8, 8], strides = [1, 1]} : vector<8x144xf32> to vector<8x8xf32>
    %51 = vector.shape_cast %50 : vector<8x8xf32> to vector<1x8x8xf32>
    %52 = vector.extract_strided_slice %26 {offsets = [0, 72], sizes = [8, 8], strides = [1, 1]} : vector<8x144xf32> to vector<8x8xf32>
    %53 = vector.shape_cast %52 : vector<8x8xf32> to vector<1x8x8xf32>
    %54 = vector.extract_strided_slice %26 {offsets = [0, 80], sizes = [8, 8], strides = [1, 1]} : vector<8x144xf32> to vector<8x8xf32>
    %55 = vector.shape_cast %54 : vector<8x8xf32> to vector<1x8x8xf32>
    %56 = vector.extract_strided_slice %26 {offsets = [0, 88], sizes = [8, 8], strides = [1, 1]} : vector<8x144xf32> to vector<8x8xf32>
    %57 = vector.shape_cast %56 : vector<8x8xf32> to vector<1x8x8xf32>
    %58 = tpu.concatenate %47, %49, %51, %53, %55, %57 in 0 : vector<1x8x8xf32>, vector<1x8x8xf32>, vector<1x8x8xf32>, vector<1x8x8xf32>, vector<1x8x8xf32>, vector<1x8x8xf32> -> vector<6x8x8xf32>
    %59 = vector.extract_strided_slice %26 {offsets = [0, 96], sizes = [8, 8], strides = [1, 1]} : vector<8x144xf32> to vector<8x8xf32>
    %60 = vector.shape_cast %59 : vector<8x8xf32> to vector<1x8x8xf32>
    %61 = vector.extract_strided_slice %26 {offsets = [0, 104], sizes = [8, 8], strides = [1, 1]} : vector<8x144xf32> to vector<8x8xf32>
    %62 = vector.shape_cast %61 : vector<8x8xf32> to vector<1x8x8xf32>
    %63 = vector.extract_strided_slice %26 {offsets = [0, 112], sizes = [8, 8], strides = [1, 1]} : vector<8x144xf32> to vector<8x8xf32>
    %64 = vector.shape_cast %63 : vector<8x8xf32> to vector<1x8x8xf32>
    %65 = vector.extract_strided_slice %26 {offsets = [0, 120], sizes = [8, 8], strides = [1, 1]} : vector<8x144xf32> to vector<8x8xf32>
    %66 = vector.shape_cast %65 : vector<8x8xf32> to vector<1x8x8xf32>
    %67 = vector.extract_strided_slice %26 {offsets = [0, 128], sizes = [8, 8], strides = [1, 1]} : vector<8x144xf32> to vector<8x8xf32>
    %68 = vector.shape_cast %67 : vector<8x8xf32> to vector<1x8x8xf32>
    %69 = vector.extract_strided_slice %26 {offsets = [0, 136], sizes = [8, 8], strides = [1, 1]} : vector<8x144xf32> to vector<8x8xf32>
    %70 = vector.shape_cast %69 : vector<8x8xf32> to vector<1x8x8xf32>
    %71 = tpu.concatenate %60, %62, %64, %66, %68, %70 in 0 : vector<1x8x8xf32>, vector<1x8x8xf32>, vector<1x8x8xf32>, vector<1x8x8xf32>, vector<1x8x8xf32>, vector<1x8x8xf32> -> vector<6x8x8xf32>
    "tpu.trace_start"() <{level = 10 : i32, message = "gqp,gkp->gqk"}> : () -> ()
    %cst_14 = arith.constant dense<0.000000e+00> : vector<6x8x8xf32>
    %72 = tpu.matmul %45, %58, %cst_14 {dimension_numbers = #tpu.dot_dimension_numbers<[2], [2], [1], [1], [0, 0, 0, 1, 1, 1], [0], [0]>} : vector<6x8x8xf32>, vector<6x8x8xf32>, vector<6x8x8xf32> -> vector<6x8x8xf32>
    "tpu.trace_stop"() : () -> ()
    %73 = vector.shape_cast %32 : vector<8x8xf32> to vector<1x8x8xf32>
    %74 = vector.broadcast %73 : vector<1x8x8xf32> to vector<6x8x8xf32>
    %75 = arith.addf %72, %74 : vector<6x8x8xf32>
    %cst_15 = arith.constant dense<0xFF800000> : vector<6x8xf32>
    %76 = vector.multi_reduction <maximumf>, %75, %cst_15 [2] : vector<6x8x8xf32> to vector<6x8xf32>
    %77 = vector.shape_cast %76 : vector<6x8xf32> to vector<6x8x1xf32>
    %78 = vector.broadcast %77 : vector<6x8x1xf32> to vector<6x8x8xf32>
    %79 = arith.subf %75, %78 : vector<6x8x8xf32>
    %80 = math.exp %79 : vector<6x8x8xf32>
    %cst_16 = arith.constant dense<0.000000e+00> : vector<6x8xf32>
    %81 = vector.multi_reduction <add>, %80, %cst_16 [2] : vector<6x8x8xf32> to vector<6x8xf32>
    %82 = vector.shape_cast %81 : vector<6x8xf32> to vector<6x8x1xf32>
    %83 = tpu.reciprocal %82 {approx = true} : vector<6x8x1xf32> -> vector<6x8x1xf32>
    %84 = vector.broadcast %83 : vector<6x8x1xf32> to vector<6x8x8xf32>
    %85 = arith.mulf %80, %84 : vector<6x8x8xf32>
    "tpu.trace_start"() <{level = 10 : i32, message = "gqk,gkp->gqp"}> : () -> ()
    %cst_17 = arith.constant dense<0.000000e+00> : vector<6x8x8xf32>
    %86 = tpu.matmul %85, %71, %cst_17 {dimension_numbers = #tpu.dot_dimension_numbers<[2], [1], [1], [2], [0, 0, 0, 1, 1, 2], [0], [0]>} : vector<6x8x8xf32>, vector<6x8x8xf32>, vector<6x8x8xf32> -> vector<6x8x8xf32>
    "tpu.trace_stop"() : () -> ()
    %87 = vector.extract_strided_slice %86 {offsets = [0, 0, 0], sizes = [1, 8, 8], strides = [1, 1, 1]} : vector<6x8x8xf32> to vector<1x8x8xf32>
    %88 = vector.shape_cast %87 : vector<1x8x8xf32> to vector<8x8xf32>
    %89 = vector.extract_strided_slice %86 {offsets = [1, 0, 0], sizes = [1, 8, 8], strides = [1, 1, 1]} : vector<6x8x8xf32> to vector<1x8x8xf32>
    %90 = vector.shape_cast %89 : vector<1x8x8xf32> to vector<8x8xf32>
    %91 = vector.extract_strided_slice %86 {offsets = [2, 0, 0], sizes = [1, 8, 8], strides = [1, 1, 1]} : vector<6x8x8xf32> to vector<1x8x8xf32>
    %92 = vector.shape_cast %91 : vector<1x8x8xf32> to vector<8x8xf32>
    %93 = vector.extract_strided_slice %86 {offsets = [3, 0, 0], sizes = [1, 8, 8], strides = [1, 1, 1]} : vector<6x8x8xf32> to vector<1x8x8xf32>
    %94 = vector.shape_cast %93 : vector<1x8x8xf32> to vector<8x8xf32>
    %95 = vector.extract_strided_slice %86 {offsets = [4, 0, 0], sizes = [1, 8, 8], strides = [1, 1, 1]} : vector<6x8x8xf32> to vector<1x8x8xf32>
    %96 = vector.shape_cast %95 : vector<1x8x8xf32> to vector<8x8xf32>
    %97 = vector.extract_strided_slice %86 {offsets = [5, 0, 0], sizes = [1, 8, 8], strides = [1, 1, 1]} : vector<6x8x8xf32> to vector<1x8x8xf32>
    %98 = vector.shape_cast %97 : vector<1x8x8xf32> to vector<8x8xf32>
    %99 = tpu.concatenate %88, %90, %92, %94, %96, %98 in 1 : vector<8x8xf32>, vector<8x8xf32>, vector<8x8xf32>, vector<8x8xf32>, vector<8x8xf32>, vector<8x8xf32> -> vector<8x48xf32>
    %c0_18 = arith.constant 0 : index
    %c0_19 = arith.constant 0 : index
    %100 = vector.load %arg5[%c0_18, %c0_19] : memref<48x32xf32, #tpu.memory_space<vmem>>, vector<48x32xf32>
    %cst_20 = arith.constant dense<0.000000e+00> : vector<8x32xf32>
    %101 = tpu.matmul %99, %100, %cst_20 {dimension_numbers = #tpu.dot_dimension_numbers<[1], [0], [0], [1], [0, 0, 1, 1], [], []>} : vector<8x48xf32>, vector<48x32xf32>, vector<8x32xf32> -> vector<8x32xf32>
    %c0_21 = arith.constant 0 : index
    %c0_22 = arith.constant 0 : index
    %102 = vector.load %arg6[%c0_21, %c0_22] : memref<1x32xf32, #tpu.memory_space<vmem>>, vector<1x32xf32>
    %103 = vector.broadcast %102 : vector<1x32xf32> to vector<8x32xf32>
    %104 = arith.addf %101, %103 : vector<8x32xf32>
    %105 = arith.addf %0, %104 : vector<8x32xf32>
    %c0_23 = arith.constant 0 : index
    %c0_24 = arith.constant 0 : index
    %106 = vector.load %arg7[%c0_23, %c0_24] : memref<1x32xf32, #tpu.memory_space<vmem>>, vector<1x32xf32>
    %c0_25 = arith.constant 0 : index
    %c0_26 = arith.constant 0 : index
    %107 = vector.load %arg8[%c0_25, %c0_26] : memref<1x32xf32, #tpu.memory_space<vmem>>, vector<1x32xf32>
    %cst_27 = arith.constant dense<0.000000e+00> : vector<8xf32>
    %108 = vector.multi_reduction <add>, %105, %cst_27 [1] : vector<8x32xf32> to vector<8xf32>
    %109 = vector.shape_cast %108 : vector<8xf32> to vector<8x1xf32>
    %cst_28 = arith.constant 3.200000e+01 : f32
    %110 = vector.broadcast %cst_28 : f32 to vector<8x1xf32>
    %111 = arith.divf %109, %110 : vector<8x1xf32>
    %112 = vector.broadcast %111 : vector<8x1xf32> to vector<8x32xf32>
    %113 = arith.subf %105, %112 : vector<8x32xf32>
    %114 = arith.mulf %113, %113 : vector<8x32xf32>
    %cst_29 = arith.constant dense<0.000000e+00> : vector<8xf32>
    %115 = vector.multi_reduction <add>, %114, %cst_29 [1] : vector<8x32xf32> to vector<8xf32>
    %116 = vector.shape_cast %115 : vector<8xf32> to vector<8x1xf32>
    %cst_30 = arith.constant 3.200000e+01 : f32
    %117 = vector.broadcast %cst_30 : f32 to vector<8x1xf32>
    %118 = arith.divf %116, %117 : vector<8x1xf32>
    %119 = vector.broadcast %111 : vector<8x1xf32> to vector<8x32xf32>
    %120 = arith.subf %105, %119 : vector<8x32xf32>
    %cst_31 = arith.constant 9.99999974E-6 : f32
    %121 = vector.broadcast %cst_31 : f32 to vector<8x1xf32>
    %122 = arith.addf %118, %121 : vector<8x1xf32>
    %123 = math.rsqrt %122 : vector<8x1xf32>
    %124 = vector.broadcast %123 : vector<8x1xf32> to vector<8x32xf32>
    %125 = arith.mulf %120, %124 : vector<8x32xf32>
    %126 = vector.broadcast %106 : vector<1x32xf32> to vector<8x32xf32>
    %127 = arith.mulf %125, %126 : vector<8x32xf32>
    %128 = vector.broadcast %107 : vector<1x32xf32> to vector<8x32xf32>
    %129 = arith.addf %127, %128 : vector<8x32xf32>
    %c0_32 = arith.constant 0 : index
    %c0_33 = arith.constant 0 : index
    %130 = vector.load %arg9[%c0_32, %c0_33] : memref<32x128xf32, #tpu.memory_space<vmem>>, vector<32x128xf32>
    %cst_34 = arith.constant dense<0.000000e+00> : vector<8x128xf32>
    %131 = tpu.matmul %129, %130, %cst_34 {dimension_numbers = #tpu.dot_dimension_numbers<[1], [0], [0], [1], [0, 0, 1, 1], [], []>} : vector<8x32xf32>, vector<32x128xf32>, vector<8x128xf32> -> vector<8x128xf32>
    %c0_35 = arith.constant 0 : index
    %c0_36 = arith.constant 0 : index
    %132 = vector.load %arg10[%c0_35, %c0_36] : memref<1x128xf32, #tpu.memory_space<vmem>>, vector<1x128xf32>
    %133 = vector.broadcast %132 : vector<1x128xf32> to vector<8x128xf32>
    %134 = arith.addf %131, %133 : vector<8x128xf32>
    %cst_37 = arith.constant 0.000000e+00 : f32
    %135 = vector.broadcast %cst_37 : f32 to vector<8x128xf32>
    %136 = arith.maximumf %134, %135 : vector<8x128xf32>
    %c0_38 = arith.constant 0 : index
    %c0_39 = arith.constant 0 : index
    %137 = vector.load %arg11[%c0_38, %c0_39] : memref<128x32xf32, #tpu.memory_space<vmem>>, vector<128x32xf32>
    %cst_40 = arith.constant dense<0.000000e+00> : vector<8x32xf32>
    %138 = tpu.matmul %136, %137, %cst_40 {dimension_numbers = #tpu.dot_dimension_numbers<[1], [0], [0], [1], [0, 0, 1, 1], [], []>} : vector<8x128xf32>, vector<128x32xf32>, vector<8x32xf32> -> vector<8x32xf32>
    %c0_41 = arith.constant 0 : index
    %c0_42 = arith.constant 0 : index
    %139 = vector.load %arg12[%c0_41, %c0_42] : memref<1x32xf32, #tpu.memory_space<vmem>>, vector<1x32xf32>
    %140 = vector.broadcast %139 : vector<1x32xf32> to vector<8x32xf32>
    %141 = arith.addf %138, %140 : vector<8x32xf32>
    %142 = arith.addf %105, %141 : vector<8x32xf32>
    %c0_43 = arith.constant 0 : index
    %c0_44 = arith.constant 0 : index
    %143 = vector.load %arg13[%c0_43, %c0_44] : memref<8x32xf32, #tpu.memory_space<vmem>>, vector<8x32xf32>
    tpu.vector_store %arg13[%c0_43, %c0_44], %142 {strides = array<i32>} : memref<8x32xf32, #tpu.memory_space<vmem>>, vector<8x32xf32>,
    return
  }
  func.func @transform_0(%arg0: i32) -> (i32, i32) {
    %c0_i32 = arith.constant 0 : i32
    %c0_i32_0 = arith.constant 0 : i32
    return %arg0, %c0_i32 : i32, i32
  }
  func.func @transform_1(%arg0: i32) -> (i32, i32) {
    %c0_i32 = arith.constant 0 : i32
    %c0_i32_0 = arith.constant 0 : i32
    %c0_i32_1 = arith.constant 0 : i32
    return %c0_i32, %c0_i32_0 : i32, i32
  }
  func.func @transform_2(%arg0: i32) -> (i32, i32) {
    %c0_i32 = arith.constant 0 : i32
    %c0_i32_0 = arith.constant 0 : i32
    %c0_i32_1 = arith.constant 0 : i32
    return %c0_i32, %c0_i32_0 : i32, i32
  }
  func.func @transform_3(%arg0: i32) -> (i32, i32) {
    %c0_i32 = arith.constant 0 : i32
    %c0_i32_0 = arith.constant 0 : i32
    %c0_i32_1 = arith.constant 0 : i32
    return %c0_i32, %c0_i32_0 : i32, i32
  }
  func.func @transform_4(%arg0: i32) -> (i32, i32) {
    %c0_i32 = arith.constant 0 : i32
    %c0_i32_0 = arith.constant 0 : i32
    %c0_i32_1 = arith.constant 0 : i32
    return %c0_i32, %c0_i32_0 : i32, i32
  }
  func.func @transform_5(%arg0: i32) -> (i32, i32) {
    %c0_i32 = arith.constant 0 : i32
    %c0_i32_0 = arith.constant 0 : i32
    %c0_i32_1 = arith.constant 0 : i32
    return %c0_i32, %c0_i32_0 : i32, i32
  }
  func.func @transform_6(%arg0: i32) -> (i32, i32) {
    %c0_i32 = arith.constant 0 : i32
    %c0_i32_0 = arith.constant 0 : i32
    %c0_i32_1 = arith.constant 0 : i32
    return %c0_i32, %c0_i32_0 : i32, i32
  }
  func.func @transform_7(%arg0: i32) -> (i32, i32) {
    %c0_i32 = arith.constant 0 : i32
    %c0_i32_0 = arith.constant 0 : i32
    %c0_i32_1 = arith.constant 0 : i32
    return %c0_i32, %c0_i32_0 : i32, i32
  }
  func.func @transform_8(%arg0: i32) -> (i32, i32) {
    %c0_i32 = arith.constant 0 : i32
    %c0_i32_0 = arith.constant 0 : i32
    %c0_i32_1 = arith.constant 0 : i32
    return %c0_i32, %c0_i32_0 : i32, i32
  }
  func.func @transform_9(%arg0: i32) -> (i32, i32) {
    %c0_i32 = arith.constant 0 : i32
    %c0_i32_0 = arith.constant 0 : i32
    %c0_i32_1 = arith.constant 0 : i32
    return %c0_i32, %c0_i32_0 : i32, i32
  }
  func.func @transform_10(%arg0: i32) -> (i32, i32) {
    %c0_i32 = arith.constant 0 : i32
    %c0_i32_0 = arith.constant 0 : i32
    %c0_i32_1 = arith.constant 0 : i32
    return %c0_i32, %c0_i32_0 : i32, i32
  }
  func.func @transform_11(%arg0: i32) -> (i32, i32) {
    %c0_i32 = arith.constant 0 : i32
    %c0_i32_0 = arith.constant 0 : i32
    %c0_i32_1 = arith.constant 0 : i32
    return %c0_i32, %c0_i32_0 : i32, i32
  }
  func.func @transform_12(%arg0: i32) -> (i32, i32) {
    %c0_i32 = arith.constant 0 : i32
    %c0_i32_0 = arith.constant 0 : i32
    return %arg0, %c0_i32 : i32, i32
  }
}

</mosaic_0001>

<llo_original>
// kernel: tpu_custom_call.1
$region0: #{tpu_custom_call.1}
  #allocation0 [shape = 'u32[]', space=smem, size = 0x4, offset = 0x4, fixed_abs, tag = 'smem constant byte address 0x4 - core index']
  #allocation1 [shape = 'u32[144,128]{1,0:T(1,128)}', space=vmem, size = 0x12000, scoped, tag = 'internal scratch']
  %s0 = inlined_call_operand.vmem [shape: f32[16,32], index: 0, kind: input, shape index: {}]
  %s1 = inlined_call_operand.vmem [shape: f32[1,32], index: 1, kind: input, shape index: {}]
  %s2 = inlined_call_operand.vmem [shape: f32[1,32], index: 2, kind: input, shape index: {}]
  %s3 = inlined_call_operand.vmem [shape: f32[32,144], index: 3, kind: input, shape index: {}]
  %s4 = inlined_call_operand.vmem [shape: f32[48,32], index: 4, kind: input, shape index: {}]
  %s5 = inlined_call_operand.vmem [shape: f32[1,32], index: 5, kind: input, shape index: {}]
  %s6 = inlined_call_operand.vmem [shape: f32[1,32], index: 6, kind: input, shape index: {}]
  %s7 = inlined_call_operand.vmem [shape: f32[1,32], index: 7, kind: input, shape index: {}]
  %s8 = inlined_call_operand.vmem [shape: f32[32,128], index: 8, kind: input, shape index: {}]
  %s9 = inlined_call_operand.vmem [shape: f32[1,128], index: 9, kind: input, shape index: {}]
  %s10 = inlined_call_operand.vmem [shape: f32[128,32], index: 10, kind: input, shape index: {}]
  %s11 = inlined_call_operand.vmem [shape: f32[1,32], index: 11, kind: input, shape index: {}]
  %s12 = inlined_call_operand.hbm [shape: f32[16,32], index: 12, kind: output, shape index: {}]
  %s13 = sld [smem:[#allocation0]]
  $region81: #{tpu_custom_call.1} parent=0
    _
  %s15 = ssub.s32 1, %s13
  %s16 = scalar_select 0, %s15, %s13
  $region1: #{tpu_custom_call.1} parent=0
    #allocation2 [shape = 'u8[8192]{0}', space=vmem, size = 0x2000, scoped, tag = 'output window, operand 0']
    #allocation3 [shape = 's32[2]{0}', space=sflag, size = 0x8, scoped, tag = 'scoped memory for tpu_custom_call.1']
    %17 = vsyncpa [#allocation3], 0
    %s18 = scalar_lea.sflag [#allocation3], 1
    %19 = vsyncpa %s18, 0
    loop: start=0, step=1, limit=4
    $region2: #{tpu_custom_call.1} parent=1 // loop_pre_header
      _
    $region3: #{tpu_custom_call.1} parent=1 // loop_header
      %s21 = sphi 0, %s25
      %p22 = scmp.ge.s32.totalorder %s21, 4
      %s31 = sphi 0, %s33
      %s34 = sphi 0, %s31
      %s35 = sphi 0, %s34
      %s51 = sphi 0, %s35
      %s55 = sphi 0, %s55
      %s57 = sphi 0, %s55
      %s58 = sphi 0, %s57
      %s72 = sphi 0, %s58
      %s76 = sphi 0, %s76
      %s78 = sphi 0, %s76
      %s79 = sphi 0, %s78
      %s93 = sphi 0, %s79
      %s97 = sphi 0, %s97
      %s99 = sphi 0, %s97
      %s100 = sphi 0, %s99
      %s114 = sphi 0, %s100
      %s118 = sphi 0, %s118
      %s120 = sphi 0, %s118
      %s121 = sphi 0, %s120
      %s135 = sphi 0, %s121
      %s139 = sphi 0, %s139
      %s141 = sphi 0, %s139
      %s142 = sphi 0, %s141
      %s156 = sphi 0, %s142
      %s160 = sphi 0, %s160
      %s162 = sphi 0, %s160
      %s163 = sphi 0, %s162
      %s177 = sphi 0, %s163
      %s181 = sphi 0, %s181
      %s183 = sphi 0, %s181
      %s184 = sphi 0, %s183
      %s198 = sphi 0, %s184
      %s202 = sphi 0, %s202
      %s204 = sphi 0, %s202
      %s205 = sphi 0, %s204
      %s219 = sphi 0, %s205
      %s223 = sphi 0, %s223
      %s225 = sphi 0, %s223
      %s226 = sphi 0, %s225
      %s240 = sphi 0, %s226
      %s244 = sphi 0, %s244
      %s246 = sphi 0, %s244
      %s247 = sphi 0, %s246
      %s261 = sphi 0, %s247
      %s265 = sphi 0, %s265
      %s267 = sphi 0, %s265
      %s268 = sphi 0, %s267
      %s282 = sphi 0, %s268
      %s288 = sphi 0, %s290
      %s291 = sphi 0, %s288
      %s292 = sphi 0, %s291
      %s308 = sphi 0, %s292
    $region4: #{tpu_custom_call.1} parent=1 // loop_header_branch
      %24 = sbr.rel (%p22) target = $region8
    $region5: #{tpu_custom_call.1} parent=1 // loop_body
      %s26 = ssub.s32 %s21, 1
      %s27 = ssub.s32 %s21, 2
      %s28 = sadd.s32 %s21, 1
      %s29 = ssub.s32 %s21, %s28
      %p30 = scmp.eq.s32.totalorder %s29, 0
      %s32 = sadd.s32 %s31, 1
      %s33 = scalar_select %p30, %s31, %s32
      %p36 = pneg %p30
      %p37 = scmp.eq.s32.totalorder %s21, 1
      %p38 = por %p36, %p37
      %p39 = scmp.ne.s32.totalorder %s31, %s34
      %p40 = scmp.eq.s32.totalorder %s21, 0
      %p41 = por %p39, %p40
      %p42 = scmp.ne.s32.totalorder %s31, %s34
      %p43 = scmp.eq.s32.totalorder %s26, 1
      %p44 = por %p42, %p43
      %p45 = scmp.ne.s32.totalorder %s34, %s35
      %p46 = scmp.eq.s32.totalorder %s26, 0
      %p47 = por %p45, %p46
      %p48 = scmp.ne.s32.totalorder %s34, %s35
      %p49 = scmp.eq.s32.totalorder %s27, 1
      %p50 = por %p48, %p49
      %p52 = scmp.ne.s32.totalorder %s35, %s51
      %p53 = scmp.eq.s32.totalorder %s27, 0
      %p54 = por %p52, %p53
      %s56 = sadd.s32 %s55, 1
      %p59 = scmp.eq.s32.totalorder %s21, 1
      %p60 = scmp.ne.s32.totalorder %s55, %s57
      %p61 = scmp.eq.s32.totalorder %s21, 0
      %p62 = por %p60, %p61
      %p63 = scmp.ne.s32.totalorder %s55, %s57
      %p64 = scmp.eq.s32.totalorder %s26, 1
      %p65 = por %p63, %p64
      %p66 = scmp.ne.s32.totalorder %s57, %s58
      %p67 = scmp.eq.s32.totalorder %s26, 0
      %p68 = por %p66, %p67
      %p69 = scmp.ne.s32.totalorder %s57, %s58
      %p70 = scmp.eq.s32.totalorder %s27, 1
      %p71 = por %p69, %p70
      %p73 = scmp.ne.s32.totalorder %s58, %s72
      %p74 = scmp.eq.s32.totalorder %s27, 0
      %p75 = por %p73, %p74
      %s77 = sadd.s32 %s76, 1
      %p80 = scmp.eq.s32.totalorder %s21, 1
      %p81 = scmp.ne.s32.totalorder %s76, %s78
      %p82 = scmp.eq.s32.totalorder %s21, 0
      %p83 = por %p81, %p82
      %p84 = scmp.ne.s32.totalorder %s76, %s78
      %p85 = scmp.eq.s32.totalorder %s26, 1
      %p86 = por %p84, %p85
      %p87 = scmp.ne.s32.totalorder %s78, %s79
      %p88 = scmp.eq.s32.totalorder %s26, 0
      %p89 = por %p87, %p88
      %p90 = scmp.ne.s32.totalorder %s78, %s79
      %p91 = scmp.eq.s32.totalorder %s27, 1
      %p92 = por %p90, %p91
      %p94 = scmp.ne.s32.totalorder %s79, %s93
      %p95 = scmp.eq.s32.totalorder %s27, 0
      %p96 = por %p94, %p95
      %s98 = sadd.s32 %s97, 1
      %p101 = scmp.eq.s32.totalorder %s21, 1
      %p102 = scmp.ne.s32.totalorder %s97, %s99
      %p103 = scmp.eq.s32.totalorder %s21, 0
      %p104 = por %p102, %p103
      %p105 = scmp.ne.s32.totalorder %s97, %s99
      %p106 = scmp.eq.s32.totalorder %s26, 1
      %p107 = por %p105, %p106
      %p108 = scmp.ne.s32.totalorder %s99, %s100
      %p109 = scmp.eq.s32.totalorder %s26, 0
      %p110 = por %p108, %p109
      %p111 = scmp.ne.s32.totalorder %s99, %s100
      %p112 = scmp.eq.s32.totalorder %s27, 1
      %p113 = por %p111, %p112
      %p115 = scmp.ne.s32.totalorder %s100, %s114
      %p116 = scmp.eq.s32.totalorder %s27, 0
      %p117 = por %p115, %p116
      %s119 = sadd.s32 %s118, 1
      %p122 = scmp.eq.s32.totalorder %s21, 1
      %p123 = scmp.ne.s32.totalorder %s118, %s120
      %p124 = scmp.eq.s32.totalorder %s21, 0
      %p125 = por %p123, %p124
      %p126 = scmp.ne.s32.totalorder %s118, %s120
      %p127 = scmp.eq.s32.totalorder %s26, 1
      %p128 = por %p126, %p127
      %p129 = scmp.ne.s32.totalorder %s120, %s121
      %p130 = scmp.eq.s32.totalorder %s26, 0
      %p131 = por %p129, %p130
      %p132 = scmp.ne.s32.totalorder %s120, %s121
      %p133 = scmp.eq.s32.totalorder %s27, 1
      %p134 = por %p132, %p133
      %p136 = scmp.ne.s32.totalorder %s121, %s135
      %p137 = scmp.eq.s32.totalorder %s27, 0
      %p138 = por %p136, %p137
      %s140 = sadd.s32 %s139, 1
      %p143 = scmp.eq.s32.totalorder %s21, 1
      %p144 = scmp.ne.s32.totalorder %s139, %s141
      %p145 = scmp.eq.s32.totalorder %s21, 0
      %p146 = por %p144, %p145
      %p147 = scmp.ne.s32.totalorder %s139, %s141
      %p148 = scmp.eq.s32.totalorder %s26, 1
      %p149 = por %p147, %p148
      %p150 = scmp.ne.s32.totalorder %s141, %s142
      %p151 = scmp.eq.s32.totalorder %s26, 0
      %p152 = por %p150, %p151
      %p153 = scmp.ne.s32.totalorder %s141, %s142
      %p154 = scmp.eq.s32.totalorder %s27, 1
      %p155 = por %p153, %p154
      %p157 = scmp.ne.s32.totalorder %s142, %s156
      %p158 = scmp.eq.s32.totalorder %s27, 0
      %p159 = por %p157, %p158
      %s161 = sadd.s32 %s160, 1
      %p164 = scmp.eq.s32.totalorder %s21, 1
      %p165 = scmp.ne.s32.totalorder %s160, %s162
      %p166 = scmp.eq.s32.totalorder %s21, 0
      %p167 = por %p165, %p166
      %p168 = scmp.ne.s32.totalorder %s160, %s162
      %p169 = scmp.eq.s32.totalorder %s26, 1
      %p170 = por %p168, %p169
      %p171 = scmp.ne.s32.totalorder %s162, %s163
      %p172 = scmp.eq.s32.totalorder %s26, 0
      %p173 = por %p171, %p172
      %p174 = scmp.ne.s32.totalorder %s162, %s163
      %p175 = scmp.eq.s32.totalorder %s27, 1
      %p176 = por %p174, %p175
      %p178 = scmp.ne.s32.totalorder %s163, %s177
      %p179 = scmp.eq.s32.totalorder %s27, 0
      %p180 = por %p178, %p179
      %s182 = sadd.s32 %s181, 1
      %p185 = scmp.eq.s32.totalorder %s21, 1
      %p186 = scmp.ne.s32.totalorder %s181, %s183
      %p187 = scmp.eq.s32.totalorder %s21, 0
      %p188 = por %p186, %p187
      %p189 = scmp.ne.s32.totalorder %s181, %s183
      %p190 = scmp.eq.s32.totalorder %s26, 1
      %p191 = por %p189, %p190
      %p192 = scmp.ne.s32.totalorder %s183, %s184
      %p193 = scmp.eq.s32.totalorder %s26, 0
      %p194 = por %p192, %p193
      %p195 = scmp.ne.s32.totalorder %s183, %s184
      %p196 = scmp.eq.s32.totalorder %s27, 1
      %p197 = por %p195, %p196
      %p199 = scmp.ne.s32.totalorder %s184, %s198
      %p200 = scmp.eq.s32.totalorder %s27, 0
      %p201 = por %p199, %p200
      %s203 = sadd.s32 %s202, 1
      %p206 = scmp.eq.s32.totalorder %s21, 1
      %p207 = scmp.ne.s32.totalorder %s202, %s204
      %p208 = scmp.eq.s32.totalorder %s21, 0
      %p209 = por %p207, %p208
      %p210 = scmp.ne.s32.totalorder %s202, %s204
      %p211 = scmp.eq.s32.totalorder %s26, 1
      %p212 = por %p210, %p211
      %p213 = scmp.ne.s32.totalorder %s204, %s205
      %p214 = scmp.eq.s32.totalorder %s26, 0
      %p215 = por %p213, %p214
      %p216 = scmp.ne.s32.totalorder %s204, %s205
      %p217 = scmp.eq.s32.totalorder %s27, 1
      %p218 = por %p216, %p217
      %p220 = scmp.ne.s32.totalorder %s205, %s219
      %p221 = scmp.eq.s32.totalorder %s27, 0
      %p222 = por %p220, %p221
      %s224 = sadd.s32 %s223, 1
      %p227 = scmp.eq.s32.totalorder %s21, 1
      %p228 = scmp.ne.s32.totalorder %s223, %s225
      %p229 = scmp.eq.s32.totalorder %s21, 0
      %p230 = por %p228, %p229
      %p231 = scmp.ne.s32.totalorder %s223, %s225
      %p232 = scmp.eq.s32.totalorder %s26, 1
      %p233 = por %p231, %p232
      %p234 = scmp.ne.s32.totalorder %s225, %s226
      %p235 = scmp.eq.s32.totalorder %s26, 0
      %p236 = por %p234, %p235
      %p237 = scmp.ne.s32.totalorder %s225, %s226
      %p238 = scmp.eq.s32.totalorder %s27, 1
      %p239 = por %p237, %p238
      %p241 = scmp.ne.s32.totalorder %s226, %s240
      %p242 = scmp.eq.s32.totalorder %s27, 0
      %p243 = por %p241, %p242
      %s245 = sadd.s32 %s244, 1
      %p248 = scmp.eq.s32.totalorder %s21, 1
      %p249 = scmp.ne.s32.totalorder %s244, %s246
      %p250 = scmp.eq.s32.totalorder %s21, 0
      %p251 = por %p249, %p250
      %p252 = scmp.ne.s32.totalorder %s244, %s246
      %p253 = scmp.eq.s32.totalorder %s26, 1
      %p254 = por %p252, %p253
      %p255 = scmp.ne.s32.totalorder %s246, %s247
      %p256 = scmp.eq.s32.totalorder %s26, 0
      %p257 = por %p255, %p256
      %p258 = scmp.ne.s32.totalorder %s246, %s247
      %p259 = scmp.eq.s32.totalorder %s27, 1
      %p260 = por %p258, %p259
      %p262 = scmp.ne.s32.totalorder %s247, %s261
      %p263 = scmp.eq.s32.totalorder %s27, 0
      %p264 = por %p262, %p263
      %s266 = sadd.s32 %s265, 1
      %p269 = scmp.eq.s32.totalorder %s21, 1
      %p270 = scmp.ne.s32.totalorder %s265, %s267
      %p271 = scmp.eq.s32.totalorder %s21, 0
      %p272 = por %p270, %p271
      %p273 = scmp.ne.s32.totalorder %s265, %s267
      %p274 = scmp.eq.s32.totalorder %s26, 1
      %p275 = por %p273, %p274
      %p276 = scmp.ne.s32.totalorder %s267, %s268
      %p277 = scmp.eq.s32.totalorder %s26, 0
      %p278 = por %p276, %p277
      %p279 = scmp.ne.s32.totalorder %s267, %s268
      %p280 = scmp.eq.s32.totalorder %s27, 1
      %p281 = por %p279, %p280
      %p283 = scmp.ne.s32.totalorder %s268, %s282
      %p284 = scmp.eq.s32.totalorder %s27, 0
      %p285 = por %p283, %p284
      %s286 = ssub.s32 %s21, %s28
      %p287 = scmp.eq.s32.totalorder %s286, 0
      %s289 = sadd.s32 %s288, 1
      %s290 = scalar_select %p287, %s288, %s289
      %p293 = pneg %p287
      %p294 = scmp.eq.s32.totalorder %s21, 1
      %p295 = por %p293, %p294
      %p296 = scmp.ne.s32.totalorder %s288, %s291
      %p297 = scmp.eq.s32.totalorder %s21, 0
      %p298 = por %p296, %p297
      %p299 = scmp.ne.s32.totalorder %s288, %s291
      %p300 = scmp.eq.s32.totalorder %s26, 1
      %p301 = por %p299, %p300
      %p302 = scmp.ne.s32.totalorder %s291, %s292
      %p303 = scmp.eq.s32.totalorder %s26, 0
      %p304 = por %p302, %p303
      %p305 = scmp.ne.s32.totalorder %s291, %s292
      %p306 = scmp.eq.s32.totalorder %s27, 1
      %p307 = por %p305, %p306
      %p309 = scmp.ne.s32.totalorder %s292, %s308
      %p310 = scmp.eq.s32.totalorder %s27, 0
      %p311 = por %p309, %p310
      %p312 = scmp.le.s32.totalorder 1, %s21
      %p313 = scmp.lt.s32.totalorder %s21, 3
      %p314 = pnand %p312, %p313
      %p315 = pneg %p314
      // Predicated region
      $region9: #{tpu_custom_call.1} parent=5 // pred_check
        _
      $region10: #{tpu_custom_call.1} parent=5 // pred_check_branch
        %317 = sbr.rel (%p314) target = $region12
      $region11: #{tpu_custom_call.1} parent=5 // pred_region
        %s318 = ssub.s32 %s21, 1
        // Predicated region
        $region13: #{tpu_custom_call.1} parent=11 // pred_check
          %p319 = pneg %p68
        $region14: #{tpu_custom_call.1} parent=11 // pred_check_branch
          %321 = sbr.rel (%p319) target = $region16
        $region15: #{tpu_custom_call.1} parent=11 // pred_region
          _
        $region16: #{tpu_custom_call.1} parent=11 // pred_fallthru
          _
        // Predicated region
        $region17: #{tpu_custom_call.1} parent=11 // pred_check
          %p322 = pneg %p89
        $region18: #{tpu_custom_call.1} parent=11 // pred_check_branch
          %324 = sbr.rel (%p322) target = $region20
        $region19: #{tpu_custom_call.1} parent=11 // pred_region
          _
        $region20: #{tpu_custom_call.1} parent=11 // pred_fallthru
          _
        // Predicated region
        $region21: #{tpu_custom_call.1} parent=11 // pred_check
          %p325 = pneg %p110
        $region22: #{tpu_custom_call.1} parent=11 // pred_check_branch
          %327 = sbr.rel (%p325) target = $region24
        $region23: #{tpu_custom_call.1} parent=11 // pred_region
          _
        $region24: #{tpu_custom_call.1} parent=11 // pred_fallthru
          _
        // Predicated region
        $region25: #{tpu_custom_call.1} parent=11 // pred_check
          %p328 = pneg %p131
        $region26: #{tpu_custom_call.1} parent=11 // pred_check_branch
          %330 = sbr.rel (%p328) target = $region28
        $region27: #{tpu_custom_call.1} parent=11 // pred_region
          _
        $region28: #{tpu_custom_call.1} parent=11 // pred_fallthru
          _
        // Predicated region
        $region29: #{tpu_custom_call.1} parent=11 // pred_check
          %p331 = pneg %p152
        $region30: #{tpu_custom_call.1} parent=11 // pred_check_branch
          %333 = sbr.rel (%p331) target = $region32
        $region31: #{tpu_custom_call.1} parent=11 // pred_region
          _
        $region32: #{tpu_custom_call.1} parent=11 // pred_fallthru
          _
        // Predicated region
        $region33: #{tpu_custom_call.1} parent=11 // pred_check
          %p334 = pneg %p173
        $region34: #{tpu_custom_call.1} parent=11 // pred_check_branch
          %336 = sbr.rel (%p334) target = $region36
        $region35: #{tpu_custom_call.1} parent=11 // pred_region
          _
        $region36: #{tpu_custom_call.1} parent=11 // pred_fallthru
          _
        // Predicated region
        $region37: #{tpu_custom_call.1} parent=11 // pred_check
          %p337 = pneg %p194
        $region38: #{tpu_custom_call.1} parent=11 // pred_check_branch
          %339 = sbr.rel (%p337) target = $region40
        $region39: #{tpu_custom_call.1} parent=11 // pred_region
          _
        $region40: #{tpu_custom_call.1} parent=11 // pred_fallthru
          _
        // Predicated region
        $region41: #{tpu_custom_call.1} parent=11 // pred_check
          %p340 = pneg %p215
        $region42: #{tpu_custom_call.1} parent=11 // pred_check_branch
          %342 = sbr.rel (%p340) target = $region44
        $region43: #{tpu_custom_call.1} parent=11 // pred_region
          _
        $region44: #{tpu_custom_call.1} parent=11 // pred_fallthru
          _
        // Predicated region
        $region45: #{tpu_custom_call.1} parent=11 // pred_check
          %p343 = pneg %p236
        $region46: #{tpu_custom_call.1} parent=11 // pred_check_branch
          %345 = sbr.rel (%p343) target = $region48
        $region47: #{tpu_custom_call.1} parent=11 // pred_region
          _
        $region48: #{tpu_custom_call.1} parent=11 // pred_fallthru
          _
        // Predicated region
        $region49: #{tpu_custom_call.1} parent=11 // pred_check
          %p346 = pneg %p257
        $region50: #{tpu_custom_call.1} parent=11 // pred_check_branch
          %348 = sbr.rel (%p346) target = $region52
        $region51: #{tpu_custom_call.1} parent=11 // pred_region
          _
        $region52: #{tpu_custom_call.1} parent=11 // pred_fallthru
          _
        // Predicated region
        $region53: #{tpu_custom_call.1} parent=11 // pred_check
          %p349 = pneg %p278
        $region54: #{tpu_custom_call.1} parent=11 // pred_check_branch
          %351 = sbr.rel (%p349) target = $region56
        $region55: #{tpu_custom_call.1} parent=11 // pred_region
          _
        $region56: #{tpu_custom_call.1} parent=11 // pred_fallthru
          _
      $region12: #{tpu_custom_call.1} parent=5 // pred_fallthru
        _
      %p352 = scmp.lt.s32.totalorder %s21, 2
      // Predicated region
      $region57: #{tpu_custom_call.1} parent=5 // pred_check
        %p353 = pneg %p352
      $region58: #{tpu_custom_call.1} parent=5 // pred_check_branch
        %355 = sbr.rel (%p353) target = $region60
      $region59: #{tpu_custom_call.1} parent=5 // pred_region
        // Predicated region
        $region61: #{tpu_custom_call.1} parent=59 // pred_check
          %p356 = pneg %p41
        $region62: #{tpu_custom_call.1} parent=59 // pred_check_branch
          %358 = sbr.rel (%p356) target = $region64
        $region63: #{tpu_custom_call.1} parent=59 // pred_region
          %p359 = scmp.lt.s32.totalorder %s21, 1
          %s360 = scalar_select %p359, %s21, 1
          %s361 = smul.addr %s360, 8
          %s362 = scalar_lea.vmem %s0, %s361
        $region64: #{tpu_custom_call.1} parent=59 // pred_fallthru
          _
      $region60: #{tpu_custom_call.1} parent=5 // pred_fallthru
        _
      %p363 = scmp.le.s32.totalorder 1, %s21
      %p364 = scmp.lt.s32.totalorder %s21, 3
      %p365 = pnand %p363, %p364
      %p366 = pneg %p365
      // Predicated region
      $region65: #{tpu_custom_call.1} parent=5 // pred_check
        _
      $region66: #{tpu_custom_call.1} parent=5 // pred_check_branch
        %368 = sbr.rel (%p365) target = $region68
      $region67: #{tpu_custom_call.1} parent=5 // pred_region
        %s369 = ssub.s32 %s21, 1
        %p370 = scmp.lt.s32.totalorder %s26, 1
        %s371 = scalar_select %p370, %s26, 1
        %s372 = smul.addr %s371, 8
        %s373 = scalar_lea.vmem %s0, %s372
        %p374 = pneg %p47
        %p375 = pneg %p44
        %p376 = pneg %p68
        %p377 = pneg %p65
        %p378 = pneg %p89
        %p379 = pneg %p86
        %p380 = pneg %p110
        %p381 = pneg %p107
        %p382 = pneg %p131
        %p383 = pneg %p128
        %p384 = pneg %p152
        %p385 = pneg %p149
        %p386 = pneg %p173
        %p387 = pneg %p170
        %p388 = pneg %p194
        %p389 = pneg %p191
        %p390 = pneg %p215
        %p391 = pneg %p212
        %p392 = pneg %p236
        %p393 = pneg %p233
        %p394 = pneg %p257
        %p395 = pneg %p254
        %p396 = pneg %p278
        %p397 = pneg %p275
        %p398 = pneg %p304
        %p399 = pneg %p301
        %s400 = sand.u32 %s291, 1
        %s401 = scalar_lea.sflag [#allocation3], %s400
        %s402 = sand.u32 %s291, 1
        %s403 = smul.addr %s402, 8
        %s404 = scalar_lea.vmem [#allocation2], %s403
        %p405 = scmp.lt.s32.totalorder %s26, 1
        %s406 = scalar_select %p405, %s26, 1
        %s407 = smul.addr %s406, 8
        %s408 = scalar_lea.vmem %s0, %s407
        %v409 = vld [vmem:[%s408] sm:$0xff]
        %v410 = vld [vmem:[%s1] sm:$0x1]
        %v411 = vld [vmem:[%s2] sm:$0x1]
        %vm412 = vcmask 261120
        %v413 = vsel %vm412, %v409, 0.0
        %414 = vadd.xlane.f32.xlu0 %v413
        %v415 = vpop.xlane.xlu0 %414
        %v416 = vrcp.pop 32.0
        %v417 = vmul.f32 %v415, %v416
        %v418 = vsub.f32 %v409, %v417
        %v419 = vmul.f32 %v418, %v418
        %v420 = vsel %vm412, %v419, 0.0
        %421 = vadd.xlane.f32.xlu0 %v420
        %v422 = vpop.xlane.xlu0 %421
        %v423 = vmul.f32 %v422, %v416
        %v424 = vadd.f32 %v423, 1e-05
        %v425 = vrsqrt.pop %v424
        %v426 = vmul.f32 %v418, %v425
        %v428 = vlaneseq
        %v429 = vshrl.u32 %v428, 7
        %v430 = vsub.s32 0, %v429
        %v431 = vrot.slane %v410, %v430
        %v433 = vmul.f32 %v426, %v431
        %v435 = vlaneseq
        %v436 = vshrl.u32 %v435, 7
        %v437 = vsub.s32 0, %v436
        %v438 = vrot.slane %v411, %v437
        %v440 = vadd.f32 %v433, %v438
        %v441 = vld [vmem:[%s3] sm:$0xff]
        %v442 = vld [vmem:[%s3 + $0x8] sm:$0xff]
        %v443 = vld [vmem:[%s3 + $0x10] sm:$0xff]
        %v444 = vld [vmem:[%s3 + $0x18] sm:$0xff]
        %v445 = vld [vmem:[%s3 + $0x20] sm:$0xff]
        %v446 = vld [vmem:[%s3 + $0x28] sm:$0xff]
        %v447 = vld [vmem:[%s3 + $0x30] sm:$0xff]
        %v448 = vld [vmem:[%s3 + $0x38] sm:$0xff]
        %v450 = vsel %vm412, %v440, 0
        %452 = vmatprep.subr.mxu0 0.0
        %453 = vmatpush1.msra.mxu0 0.0
        %454 = vmatprep.subr.mxu0 0.0
        %455 = vmatpush1.msra.mxu0 0.0
        %456 = vmatprep.subr.mxu0 0.0
        %457 = vmatpush1.msra.mxu0 0.0
        %458 = vmatprep.subr.mxu0 0.0
        %459 = vmatpush1.msra.mxu0 0.0
        %460 = vmatprep.subr.mxu0 0.0
        %461 = vmatpush1.msra.mxu0 0.0
        %462 = vmatprep.subr.mxu0 0.0
        %463 = vmatpush1.msra.mxu0 0.0
        %464 = vmatprep.subr.mxu0 0.0
        %465 = vmatpush1.msra.mxu0 0.0
        %466 = vmatprep.subr.mxu0 0.0
        %467 = vmatpush1.msra.mxu0 0.0
        %468 = vmatprep.subr.mxu0 0.0
        %469 = vmatpush1.msra.mxu0 0.0
        %470 = vmatprep.subr.mxu0 0.0
        %471 = vmatpush1.msra.mxu0 0.0
        %472 = vmatprep.subr.mxu0 0.0
        %473 = vmatpush1.msra.mxu0 0.0
        %474 = vmatprep.subr.mxu0 0.0
        %475 = vmatpush1.msra.mxu0 0.0
        %476 = vmatprep.subr.mxu0 %v448
        %477 = vmatpush1.msra.mxu0 %v447
        %478 = vmatprep.subr.mxu0 %v446
        %479 = vmatpush1.msra.mxu0 %v445
        %480 = vmatprep.subr.mxu0 %v444
        %481 = vmatpush1.msra.mxu0 %v443
        %482 = vmatprep.subr.mxu0 %v442
        %483 = vmatpush1.msra.mxu0 %v441
        %484 = vmatprep.subr.mxu0 0.0
        %485 = vmatpush2.msra.mxu0 0.0
        %486 = vmatprep.subr.mxu0 0.0
        %487 = vmatpush2.msra.mxu0 0.0
        %488 = vmatprep.subr.mxu0 0.0
        %489 = vmatpush2.msra.mxu0 0.0
        %490 = vmatprep.subr.mxu0 0.0
        %491 = vmatpush2.msra.mxu0 0.0
        %492 = vmatprep.subr.mxu0 0.0
        %493 = vmatpush2.msra.mxu0 0.0
        %494 = vmatprep.subr.mxu0 0.0
        %495 = vmatpush2.msra.mxu0 0.0
        %496 = vmatprep.subr.mxu0 0.0
        %497 = vmatpush2.msra.mxu0 0.0
        %498 = vmatprep.subr.mxu0 0.0
        %499 = vmatpush2.msra.mxu0 0.0
        %500 = vmatprep.subr.mxu0 0.0
        %501 = vmatpush2.msra.mxu0 0.0
        %502 = vmatprep.subr.mxu0 0.0
        %503 = vmatpush2.msra.mxu0 0.0
        %504 = vmatprep.subr.mxu0 0.0
        %505 = vmatpush2.msra.mxu0 0.0
        %506 = vmatprep.subr.mxu0 0.0
        %507 = vmatpush2.msra.mxu0 0.0
        %508 = vmatprep.subr.mxu0 0.0
        %509 = vmatpush2.msra.mxu0 0.0
        %510 = vmatprep.subr.mxu0 0.0
        %511 = vmatpush2.msra.mxu0 0.0
        %512 = vmatprep.subr.mxu0 0.0
        %513 = vmatpush2.msra.mxu0 0.0
        %514 = vmatprep.subr.mxu0 0.0
        %515 = vmatpush2.msra.mxu0 0.0
        %516 = vmatprep.mubr.f32.mxu0 0.0
        %517 = vmatmul.mubr.f32.gmra.mxu0 %v450
        %v518 = vpop.f32.mrf.mxu0
        %v519 = vadd.f32 0.0, %v518
        %v520 = vpop.f32.mrf.mxu0
        %v521 = vadd.f32 0.0, %v520
        %522 = vdwg.mxu0
        %v523 = vlaneseq
        %v524 = vshrl.u32 %v523, 7
        %v525 = vlaneseq
        %v526 = vand.u32 %v525, 127
        %vm527 = vcmp.le.s32.totalorder %v526, %v524
        %v528 = vsel %vm527, 0.0, -1e+30
        %530 = vrot.lane.b32.xlu0 %v519, 120
        %v531 = vpop.permute.xlu0 %530
        %532 = vrot.lane.b32.xlu0 %v519, 112
        %v533 = vpop.permute.xlu0 %532
        %534 = vrot.lane.b32.xlu0 %v519, 104
        %v535 = vpop.permute.xlu0 %534
        %536 = vrot.lane.b32.xlu0 %v519, 96
        %v537 = vpop.permute.xlu0 %536
        %538 = vrot.lane.b32.xlu0 %v519, 88
        %v539 = vpop.permute.xlu0 %538
        %541 = vrot.lane.b32.xlu0 %v521, 96
        %v542 = vpop.permute.xlu0 %541
        %543 = vrot.lane.b32.xlu0 %v521, 88
        %v544 = vpop.permute.xlu0 %543
        %545 = vrot.lane.b32.xlu0 %v519, 80
        %v546 = vpop.permute.xlu0 %545
        %vm547 = vcmask 64512
        %v548 = vsel %vm547, %v519, 0
        %v550 = vsel %vm547, %v546, 0
        %552 = vmatprep.subr.mxu0 0.0
        %553 = vmatpush1.xpose.msra.mxu0 0.0
        %554 = vmatprep.subr.mxu0 0.0
        %555 = vmatpush1.xpose.msra.mxu0 0.0
        %556 = vmatprep.subr.mxu0 0.0
        %557 = vmatpush1.xpose.msra.mxu0 0.0
        %558 = vmatprep.subr.mxu0 0.0
        %559 = vmatpush1.xpose.msra.mxu0 0.0
        %560 = vmatprep.subr.mxu0 0.0
        %561 = vmatpush1.xpose.msra.mxu0 0.0
        %562 = vmatprep.subr.mxu0 0.0
        %563 = vmatpush1.xpose.msra.mxu0 0.0
        %564 = vmatprep.subr.mxu0 0.0
        %565 = vmatpush1.xpose.msra.mxu0 0.0
        %566 = vmatprep.subr.mxu0 0.0
        %567 = vmatpush1.xpose.msra.mxu0 0.0
        %568 = vmatprep.subr.mxu0 0.0
        %569 = vmatpush1.xpose.msra.mxu0 0.0
        %570 = vmatprep.subr.mxu0 0.0
        %571 = vmatpush1.xpose.msra.mxu0 0.0
        %572 = vmatprep.subr.mxu0 0.0
        %573 = vmatpush1.xpose.msra.mxu0 0.0
        %574 = vmatprep.subr.mxu0 0.0
        %575 = vmatpush1.xpose.msra.mxu0 0.0
        %576 = vmatprep.subr.mxu0 0.0
        %577 = vmatpush1.xpose.msra.mxu0 0.0
        %578 = vmatprep.subr.mxu0 0.0
        %579 = vmatpush1.xpose.msra.mxu0 0.0
        %580 = vmatprep.subr.mxu0 0.0
        %581 = vmatpush1.xpose.msra.mxu0 0.0
        %582 = vmatprep.subr.mxu0 0.0
        %583 = vmatpush1.xpose.msra.mxu0 %v550
        %584 = vmatprep.subr.mxu0 0.0
        %585 = vmatpush2.xpose.msra.mxu0 0.0
        %586 = vmatprep.subr.mxu0 0.0
        %587 = vmatpush2.xpose.msra.mxu0 0.0
        %588 = vmatprep.subr.mxu0 0.0
        %589 = vmatpush2.xpose.msra.mxu0 0.0
        %590 = vmatprep.subr.mxu0 0.0
        %591 = vmatpush2.xpose.msra.mxu0 0.0
        %592 = vmatprep.subr.mxu0 0.0
        %593 = vmatpush2.xpose.msra.mxu0 0.0
        %594 = vmatprep.subr.mxu0 0.0
        %595 = vmatpush2.xpose.msra.mxu0 0.0
        %596 = vmatprep.subr.mxu0 0.0
        %597 = vmatpush2.xpose.msra.mxu0 0.0
        %598 = vmatprep.subr.mxu0 0.0
        %599 = vmatpush2.xpose.msra.mxu0 0.0
        %600 = vmatprep.subr.mxu0 0.0
        %601 = vmatpush2.xpose.msra.mxu0 0.0
        %602 = vmatprep.subr.mxu0 0.0
        %603 = vmatpush2.xpose.msra.mxu0 0.0
        %604 = vmatprep.subr.mxu0 0.0
        %605 = vmatpush2.xpose.msra.mxu0 0.0
        %606 = vmatprep.subr.mxu0 0.0
        %607 = vmatpush2.xpose.msra.mxu0 0.0
        %608 = vmatprep.subr.mxu0 0.0
        %609 = vmatpush2.xpose.msra.mxu0 0.0
        %610 = vmatprep.subr.mxu0 0.0
        %611 = vmatpush2.xpose.msra.mxu0 0.0
        %612 = vmatprep.subr.mxu0 0.0
        %613 = vmatpush2.xpose.msra.mxu0 0.0
        %614 = vmatprep.subr.mxu0 0.0
        %615 = vmatpush2.xpose.msra.mxu0 0.0
        %616 = vmatprep.mubr.f32.mxu0 0.0
        %617 = vmatmul.mubr.f32.gmra.mxu0 %v548
        %v618 = vpop.f32.mrf.mxu0
        %v619 = vadd.f32 %v528, %v618
        %v620 = vpop.f32.mrf.mxu0
        %621 = vdwg.mxu0
        %622 = vrot.lane.b32.xlu0 %v531, 80
        %v623 = vpop.permute.xlu0 %622
        %v624 = vsel %vm547, %v531, 0
        %v626 = vsel %vm547, %v623, 0
        %628 = vmatprep.subr.mxu0 0.0
        %629 = vmatpush1.xpose.msra.mxu0 0.0
        %630 = vmatprep.subr.mxu0 0.0
        %631 = vmatpush1.xpose.msra.mxu0 0.0
        %632 = vmatprep.subr.mxu0 0.0
        %633 = vmatpush1.xpose.msra.mxu0 0.0
        %634 = vmatprep.subr.mxu0 0.0
        %635 = vmatpush1.xpose.msra.mxu0 0.0
        %636 = vmatprep.subr.mxu0 0.0
        %637 = vmatpush1.xpose.msra.mxu0 0.0
        %638 = vmatprep.subr.mxu0 0.0
        %639 = vmatpush1.xpose.msra.mxu0 0.0
        %640 = vmatprep.subr.mxu0 0.0
        %641 = vmatpush1.xpose.msra.mxu0 0.0
        %642 = vmatprep.subr.mxu0 0.0
        %643 = vmatpush1.xpose.msra.mxu0 0.0
        %644 = vmatprep.subr.mxu0 0.0
        %645 = vmatpush1.xpose.msra.mxu0 0.0
        %646 = vmatprep.subr.mxu0 0.0
        %647 = vmatpush1.xpose.msra.mxu0 0.0
        %648 = vmatprep.subr.mxu0 0.0
        %649 = vmatpush1.xpose.msra.mxu0 0.0
        %650 = vmatprep.subr.mxu0 0.0
        %651 = vmatpush1.xpose.msra.mxu0 0.0
        %652 = vmatprep.subr.mxu0 0.0
        %653 = vmatpush1.xpose.msra.mxu0 0.0
        %654 = vmatprep.subr.mxu0 0.0
        %655 = vmatpush1.xpose.msra.mxu0 0.0
        %656 = vmatprep.subr.mxu0 0.0
        %657 = vmatpush1.xpose.msra.mxu0 0.0
        %658 = vmatprep.subr.mxu0 0.0
        %659 = vmatpush1.xpose.msra.mxu0 %v626
        %660 = vmatprep.subr.mxu0 0.0
        %661 = vmatpush2.xpose.msra.mxu0 0.0
        %662 = vmatprep.subr.mxu0 0.0
        %663 = vmatpush2.xpose.msra.mxu0 0.0
        %664 = vmatprep.subr.mxu0 0.0
        %665 = vmatpush2.xpose.msra.mxu0 0.0
        %666 = vmatprep.subr.mxu0 0.0
        %667 = vmatpush2.xpose.msra.mxu0 0.0
        %668 = vmatprep.subr.mxu0 0.0
        %669 = vmatpush2.xpose.msra.mxu0 0.0
        %670 = vmatprep.subr.mxu0 0.0
        %671 = vmatpush2.xpose.msra.mxu0 0.0
        %672 = vmatprep.subr.mxu0 0.0
        %673 = vmatpush2.xpose.msra.mxu0 0.0
        %674 = vmatprep.subr.mxu0 0.0
        %675 = vmatpush2.xpose.msra.mxu0 0.0
        %676 = vmatprep.subr.mxu0 0.0
        %677 = vmatpush2.xpose.msra.mxu0 0.0
        %678 = vmatprep.subr.mxu0 0.0
        %679 = vmatpush2.xpose.msra.mxu0 0.0
        %680 = vmatprep.subr.mxu0 0.0
        %681 = vmatpush2.xpose.msra.mxu0 0.0
        %682 = vmatprep.subr.mxu0 0.0
        %683 = vmatpush2.xpose.msra.mxu0 0.0
        %684 = vmatprep.subr.mxu0 0.0
        %685 = vmatpush2.xpose.msra.mxu0 0.0
        %686 = vmatprep.subr.mxu0 0.0
        %687 = vmatpush2.xpose.msra.mxu0 0.0
        %688 = vmatprep.subr.mxu0 0.0
        %689 = vmatpush2.xpose.msra.mxu0 0.0
        %690 = vmatprep.subr.mxu0 0.0
        %691 = vmatpush2.xpose.msra.mxu0 0.0
        %692 = vmatprep.mubr.f32.mxu0 0.0
        %693 = vmatmul.mubr.f32.gmra.mxu0 %v624
        %v694 = vpop.f32.mrf.mxu0
        %v695 = vadd.f32 %v528, %v694
        %v696 = vpop.f32.mrf.mxu0
        %697 = vdwg.mxu0
        %698 = vrot.lane.b32.xlu0 %v533, 80
        %v699 = vpop.permute.xlu0 %698
        %v700 = vsel %vm547, %v533, 0
        %v702 = vsel %vm547, %v699, 0
        %704 = vmatprep.subr.mxu0 0.0
        %705 = vmatpush1.xpose.msra.mxu0 0.0
        %706 = vmatprep.subr.mxu0 0.0
        %707 = vmatpush1.xpose.msra.mxu0 0.0
        %708 = vmatprep.subr.mxu0 0.0
        %709 = vmatpush1.xpose.msra.mxu0 0.0
        %710 = vmatprep.subr.mxu0 0.0
        %711 = vmatpush1.xpose.msra.mxu0 0.0
        %712 = vmatprep.subr.mxu0 0.0
        %713 = vmatpush1.xpose.msra.mxu0 0.0
        %714 = vmatprep.subr.mxu0 0.0
        %715 = vmatpush1.xpose.msra.mxu0 0.0
        %716 = vmatprep.subr.mxu0 0.0
        %717 = vmatpush1.xpose.msra.mxu0 0.0
        %718 = vmatprep.subr.mxu0 0.0
        %719 = vmatpush1.xpose.msra.mxu0 0.0
        %720 = vmatprep.subr.mxu0 0.0
        %721 = vmatpush1.xpose.msra.mxu0 0.0
        %722 = vmatprep.subr.mxu0 0.0
        %723 = vmatpush1.xpose.msra.mxu0 0.0
        %724 = vmatprep.subr.mxu0 0.0
        %725 = vmatpush1.xpose.msra.mxu0 0.0
        %726 = vmatprep.subr.mxu0 0.0
        %727 = vmatpush1.xpose.msra.mxu0 0.0
        %728 = vmatprep.subr.mxu0 0.0
        %729 = vmatpush1.xpose.msra.mxu0 0.0
        %730 = vmatprep.subr.mxu0 0.0
        %731 = vmatpush1.xpose.msra.mxu0 0.0
        %732 = vmatprep.subr.mxu0 0.0
        %733 = vmatpush1.xpose.msra.mxu0 0.0
        %734 = vmatprep.subr.mxu0 0.0
        %735 = vmatpush1.xpose.msra.mxu0 %v702
        %736 = vmatprep.subr.mxu0 0.0
        %737 = vmatpush2.xpose.msra.mxu0 0.0
        %738 = vmatprep.subr.mxu0 0.0
        %739 = vmatpush2.xpose.msra.mxu0 0.0
        %740 = vmatprep.subr.mxu0 0.0
        %741 = vmatpush2.xpose.msra.mxu0 0.0
        %742 = vmatprep.subr.mxu0 0.0
        %743 = vmatpush2.xpose.msra.mxu0 0.0
        %744 = vmatprep.subr.mxu0 0.0
        %745 = vmatpush2.xpose.msra.mxu0 0.0
        %746 = vmatprep.subr.mxu0 0.0
        %747 = vmatpush2.xpose.msra.mxu0 0.0
        %748 = vmatprep.subr.mxu0 0.0
        %749 = vmatpush2.xpose.msra.mxu0 0.0
        %750 = vmatprep.subr.mxu0 0.0
        %751 = vmatpush2.xpose.msra.mxu0 0.0
        %752 = vmatprep.subr.mxu0 0.0
        %753 = vmatpush2.xpose.msra.mxu0 0.0
        %754 = vmatprep.subr.mxu0 0.0
        %755 = vmatpush2.xpose.msra.mxu0 0.0
        %756 = vmatprep.subr.mxu0 0.0
        %757 = vmatpush2.xpose.msra.mxu0 0.0
        %758 = vmatprep.subr.mxu0 0.0
        %759 = vmatpush2.xpose.msra.mxu0 0.0
        %760 = vmatprep.subr.mxu0 0.0
        %761 = vmatpush2.xpose.msra.mxu0 0.0
        %762 = vmatprep.subr.mxu0 0.0
        %763 = vmatpush2.xpose.msra.mxu0 0.0
        %764 = vmatprep.subr.mxu0 0.0
        %765 = vmatpush2.xpose.msra.mxu0 0.0
        %766 = vmatprep.subr.mxu0 0.0
        %767 = vmatpush2.xpose.msra.mxu0 0.0
        %768 = vmatprep.mubr.f32.mxu0 0.0
        %769 = vmatmul.mubr.f32.gmra.mxu0 %v700
        %v770 = vpop.f32.mrf.mxu0
        %v771 = vadd.f32 %v528, %v770
        %v772 = vpop.f32.mrf.mxu0
        %773 = vdwg.mxu0
        %774 = vrot.lane.b32.xlu0 %v535, 80
        %v775 = vpop.permute.xlu0 %774
        %v776 = vsel %vm547, %v535, 0
        %v778 = vsel %vm547, %v775, 0
        %780 = vmatprep.subr.mxu0 0.0
        %781 = vmatpush1.xpose.msra.mxu0 0.0
        %782 = vmatprep.subr.mxu0 0.0
        %783 = vmatpush1.xpose.msra.mxu0 0.0
        %784 = vmatprep.subr.mxu0 0.0
        %785 = vmatpush1.xpose.msra.mxu0 0.0
        %786 = vmatprep.subr.mxu0 0.0
        %787 = vmatpush1.xpose.msra.mxu0 0.0
        %788 = vmatprep.subr.mxu0 0.0
        %789 = vmatpush1.xpose.msra.mxu0 0.0
        %790 = vmatprep.subr.mxu0 0.0
        %791 = vmatpush1.xpose.msra.mxu0 0.0
        %792 = vmatprep.subr.mxu0 0.0
        %793 = vmatpush1.xpose.msra.mxu0 0.0
        %794 = vmatprep.subr.mxu0 0.0
        %795 = vmatpush1.xpose.msra.mxu0 0.0
        %796 = vmatprep.subr.mxu0 0.0
        %797 = vmatpush1.xpose.msra.mxu0 0.0
        %798 = vmatprep.subr.mxu0 0.0
        %799 = vmatpush1.xpose.msra.mxu0 0.0
        %800 = vmatprep.subr.mxu0 0.0
        %801 = vmatpush1.xpose.msra.mxu0 0.0
        %802 = vmatprep.subr.mxu0 0.0
        %803 = vmatpush1.xpose.msra.mxu0 0.0
        %804 = vmatprep.subr.mxu0 0.0
        %805 = vmatpush1.xpose.msra.mxu0 0.0
        %806 = vmatprep.subr.mxu0 0.0
        %807 = vmatpush1.xpose.msra.mxu0 0.0
        %808 = vmatprep.subr.mxu0 0.0
        %809 = vmatpush1.xpose.msra.mxu0 0.0
        %810 = vmatprep.subr.mxu0 0.0
        %811 = vmatpush1.xpose.msra.mxu0 %v778
        %812 = vmatprep.subr.mxu0 0.0
        %813 = vmatpush2.xpose.msra.mxu0 0.0
        %814 = vmatprep.subr.mxu0 0.0
        %815 = vmatpush2.xpose.msra.mxu0 0.0
        %816 = vmatprep.subr.mxu0 0.0
        %817 = vmatpush2.xpose.msra.mxu0 0.0
        %818 = vmatprep.subr.mxu0 0.0
        %819 = vmatpush2.xpose.msra.mxu0 0.0
        %820 = vmatprep.subr.mxu0 0.0
        %821 = vmatpush2.xpose.msra.mxu0 0.0
        %822 = vmatprep.subr.mxu0 0.0
        %823 = vmatpush2.xpose.msra.mxu0 0.0
        %824 = vmatprep.subr.mxu0 0.0
        %825 = vmatpush2.xpose.msra.mxu0 0.0
        %826 = vmatprep.subr.mxu0 0.0
        %827 = vmatpush2.xpose.msra.mxu0 0.0
        %828 = vmatprep.subr.mxu0 0.0
        %829 = vmatpush2.xpose.msra.mxu0 0.0
        %830 = vmatprep.subr.mxu0 0.0
        %831 = vmatpush2.xpose.msra.mxu0 0.0
        %832 = vmatprep.subr.mxu0 0.0
        %833 = vmatpush2.xpose.msra.mxu0 0.0
        %834 = vmatprep.subr.mxu0 0.0
        %835 = vmatpush2.xpose.msra.mxu0 0.0
        %836 = vmatprep.subr.mxu0 0.0
        %837 = vmatpush2.xpose.msra.mxu0 0.0
        %838 = vmatprep.subr.mxu0 0.0
        %839 = vmatpush2.xpose.msra.mxu0 0.0
        %840 = vmatprep.subr.mxu0 0.0
        %841 = vmatpush2.xpose.msra.mxu0 0.0
        %842 = vmatprep.subr.mxu0 0.0
        %843 = vmatpush2.xpose.msra.mxu0 0.0
        %844 = vmatprep.mubr.f32.mxu0 0.0
        %845 = vmatmul.mubr.f32.gmra.mxu0 %v776
        %v846 = vpop.f32.mrf.mxu0
        %v847 = vadd.f32 %v528, %v846
        %v848 = vpop.f32.mrf.mxu0
        %849 = vdwg.mxu0
        %850 = vrot.lane.b32.xlu0 %v537, 80
        %v851 = vpop.permute.xlu0 %850
        %v852 = vsel %vm547, %v537, 0
        %v854 = vsel %vm547, %v851, 0
        %856 = vmatprep.subr.mxu0 0.0
        %857 = vmatpush1.xpose.msra.mxu0 0.0
        %858 = vmatprep.subr.mxu0 0.0
        %859 = vmatpush1.xpose.msra.mxu0 0.0
        %860 = vmatprep.subr.mxu0 0.0
        %861 = vmatpush1.xpose.msra.mxu0 0.0
        %862 = vmatprep.subr.mxu0 0.0
        %863 = vmatpush1.xpose.msra.mxu0 0.0
        %864 = vmatprep.subr.mxu0 0.0
        %865 = vmatpush1.xpose.msra.mxu0 0.0
        %866 = vmatprep.subr.mxu0 0.0
        %867 = vmatpush1.xpose.msra.mxu0 0.0
        %868 = vmatprep.subr.mxu0 0.0
        %869 = vmatpush1.xpose.msra.mxu0 0.0
        %870 = vmatprep.subr.mxu0 0.0
        %871 = vmatpush1.xpose.msra.mxu0 0.0
        %872 = vmatprep.subr.mxu0 0.0
        %873 = vmatpush1.xpose.msra.mxu0 0.0
        %874 = vmatprep.subr.mxu0 0.0
        %875 = vmatpush1.xpose.msra.mxu0 0.0
        %876 = vmatprep.subr.mxu0 0.0
        %877 = vmatpush1.xpose.msra.mxu0 0.0
        %878 = vmatprep.subr.mxu0 0.0
        %879 = vmatpush1.xpose.msra.mxu0 0.0
        %880 = vmatprep.subr.mxu0 0.0
        %881 = vmatpush1.xpose.msra.mxu0 0.0
        %882 = vmatprep.subr.mxu0 0.0
        %883 = vmatpush1.xpose.msra.mxu0 0.0
        %884 = vmatprep.subr.mxu0 0.0
        %885 = vmatpush1.xpose.msra.mxu0 0.0
        %886 = vmatprep.subr.mxu0 0.0
        %887 = vmatpush1.xpose.msra.mxu0 %v854
        %888 = vmatprep.subr.mxu0 0.0
        %889 = vmatpush2.xpose.msra.mxu0 0.0
        %890 = vmatprep.subr.mxu0 0.0
        %891 = vmatpush2.xpose.msra.mxu0 0.0
        %892 = vmatprep.subr.mxu0 0.0
        %893 = vmatpush2.xpose.msra.mxu0 0.0
        %894 = vmatprep.subr.mxu0 0.0
        %895 = vmatpush2.xpose.msra.mxu0 0.0
        %896 = vmatprep.subr.mxu0 0.0
        %897 = vmatpush2.xpose.msra.mxu0 0.0
        %898 = vmatprep.subr.mxu0 0.0
        %899 = vmatpush2.xpose.msra.mxu0 0.0
        %900 = vmatprep.subr.mxu0 0.0
        %901 = vmatpush2.xpose.msra.mxu0 0.0
        %902 = vmatprep.subr.mxu0 0.0
        %903 = vmatpush2.xpose.msra.mxu0 0.0
        %904 = vmatprep.subr.mxu0 0.0
        %905 = vmatpush2.xpose.msra.mxu0 0.0
        %906 = vmatprep.subr.mxu0 0.0
        %907 = vmatpush2.xpose.msra.mxu0 0.0
        %908 = vmatprep.subr.mxu0 0.0
        %909 = vmatpush2.xpose.msra.mxu0 0.0
        %910 = vmatprep.subr.mxu0 0.0
        %911 = vmatpush2.xpose.msra.mxu0 0.0
        %912 = vmatprep.subr.mxu0 0.0
        %913 = vmatpush2.xpose.msra.mxu0 0.0
        %914 = vmatprep.subr.mxu0 0.0
        %915 = vmatpush2.xpose.msra.mxu0 0.0
        %916 = vmatprep.subr.mxu0 0.0
        %917 = vmatpush2.xpose.msra.mxu0 0.0
        %918 = vmatprep.subr.mxu0 0.0
        %919 = vmatpush2.xpose.msra.mxu0 0.0
        %920 = vmatprep.mubr.f32.mxu0 0.0
        %921 = vmatmul.mubr.f32.gmra.mxu0 %v852
        %v922 = vpop.f32.mrf.mxu0
        %v923 = vadd.f32 %v528, %v922
        %v924 = vpop.f32.mrf.mxu0
        %925 = vdwg.mxu0
        %926 = vrot.lane.b32.xlu0 %v539, 80
        %v927 = vpop.permute.xlu0 %926
        %v928 = vsel %vm547, %v539, 0
        %v930 = vsel %vm547, %v927, 0
        %932 = vmatprep.subr.mxu0 0.0
        %933 = vmatpush1.xpose.msra.mxu0 0.0
        %934 = vmatprep.subr.mxu0 0.0
        %935 = vmatpush1.xpose.msra.mxu0 0.0
        %936 = vmatprep.subr.mxu0 0.0
        %937 = vmatpush1.xpose.msra.mxu0 0.0
        %938 = vmatprep.subr.mxu0 0.0
        %939 = vmatpush1.xpose.msra.mxu0 0.0
        %940 = vmatprep.subr.mxu0 0.0
        %941 = vmatpush1.xpose.msra.mxu0 0.0
        %942 = vmatprep.subr.mxu0 0.0
        %943 = vmatpush1.xpose.msra.mxu0 0.0
        %944 = vmatprep.subr.mxu0 0.0
        %945 = vmatpush1.xpose.msra.mxu0 0.0
        %946 = vmatprep.subr.mxu0 0.0
        %947 = vmatpush1.xpose.msra.mxu0 0.0
        %948 = vmatprep.subr.mxu0 0.0
        %949 = vmatpush1.xpose.msra.mxu0 0.0
        %950 = vmatprep.subr.mxu0 0.0
        %951 = vmatpush1.xpose.msra.mxu0 0.0
        %952 = vmatprep.subr.mxu0 0.0
        %953 = vmatpush1.xpose.msra.mxu0 0.0
        %954 = vmatprep.subr.mxu0 0.0
        %955 = vmatpush1.xpose.msra.mxu0 0.0
        %956 = vmatprep.subr.mxu0 0.0
        %957 = vmatpush1.xpose.msra.mxu0 0.0
        %958 = vmatprep.subr.mxu0 0.0
        %959 = vmatpush1.xpose.msra.mxu0 0.0
        %960 = vmatprep.subr.mxu0 0.0
        %961 = vmatpush1.xpose.msra.mxu0 0.0
        %962 = vmatprep.subr.mxu0 0.0
        %963 = vmatpush1.xpose.msra.mxu0 %v930
        %964 = vmatprep.subr.mxu0 0.0
        %965 = vmatpush2.xpose.msra.mxu0 0.0
        %966 = vmatprep.subr.mxu0 0.0
        %967 = vmatpush2.xpose.msra.mxu0 0.0
        %968 = vmatprep.subr.mxu0 0.0
        %969 = vmatpush2.xpose.msra.mxu0 0.0
        %970 = vmatprep.subr.mxu0 0.0
        %971 = vmatpush2.xpose.msra.mxu0 0.0
        %972 = vmatprep.subr.mxu0 0.0
        %973 = vmatpush2.xpose.msra.mxu0 0.0
        %974 = vmatprep.subr.mxu0 0.0
        %975 = vmatpush2.xpose.msra.mxu0 0.0
        %976 = vmatprep.subr.mxu0 0.0
        %977 = vmatpush2.xpose.msra.mxu0 0.0
        %978 = vmatprep.subr.mxu0 0.0
        %979 = vmatpush2.xpose.msra.mxu0 0.0
        %980 = vmatprep.subr.mxu0 0.0
        %981 = vmatpush2.xpose.msra.mxu0 0.0
        %982 = vmatprep.subr.mxu0 0.0
        %983 = vmatpush2.xpose.msra.mxu0 0.0
        %984 = vmatprep.subr.mxu0 0.0
        %985 = vmatpush2.xpose.msra.mxu0 0.0
        %986 = vmatprep.subr.mxu0 0.0
        %987 = vmatpush2.xpose.msra.mxu0 0.0
        %988 = vmatprep.subr.mxu0 0.0
        %989 = vmatpush2.xpose.msra.mxu0 0.0
        %990 = vmatprep.subr.mxu0 0.0
        %991 = vmatpush2.xpose.msra.mxu0 0.0
        %992 = vmatprep.subr.mxu0 0.0
        %993 = vmatpush2.xpose.msra.mxu0 0.0
        %994 = vmatprep.subr.mxu0 0.0
        %995 = vmatpush2.xpose.msra.mxu0 0.0
        %996 = vmatprep.mubr.f32.mxu0 0.0
        %997 = vmatmul.mubr.f32.gmra.mxu0 %v928
        %v998 = vpop.f32.mrf.mxu0
        %v999 = vadd.f32 %v528, %v998
        %v1000 = vpop.f32.mrf.mxu0
        %1001 = vdwg.mxu0
        %v1002 = vsel %vm547, %v619, -inf
        %1003 = vmax.xlane.f32.xlu0 %v1002
        %v1004 = vpop.xlane.xlu0 %1003
        %v1005 = vsel %vm547, %v695, -inf
        %1006 = vmax.xlane.f32.xlu0 %v1005
        %v1007 = vpop.xlane.xlu0 %1006
        %v1008 = vsel %vm547, %v771, -inf
        %1009 = vmax.xlane.f32.xlu0 %v1008
        %v1010 = vpop.xlane.xlu0 %1009
        %v1011 = vsel %vm547, %v847, -inf
        %1012 = vmax.xlane.f32.xlu0 %v1011
        %v1013 = vpop.xlane.xlu0 %1012
        %v1014 = vsel %vm547, %v923, -inf
        %1015 = vmax.xlane.f32.xlu0 %v1014
        %v1016 = vpop.xlane.xlu0 %1015
        %v1017 = vsel %vm547, %v999, -inf
        %1018 = vmax.xlane.f32.xlu0 %v1017
        %v1019 = vpop.xlane.xlu0 %1018
        %v1020 = vsub.f32 %v619, %v1004
        %v1021 = vsub.f32 %v695, %v1007
        %v1022 = vsub.f32 %v771, %v1010
        %v1023 = vsub.f32 %v847, %v1013
        %v1024 = vsub.f32 %v923, %v1016
        %v1025 = vsub.f32 %v999, %v1019
        %v1026 = vmul.f32 %v1020, 1.442695
        %v1027 = vpow.pop %v1026
        %v1028 = vmul.f32 %v1021, 1.442695
        %v1029 = vpow.pop %v1028
        %v1030 = vmul.f32 %v1022, 1.442695
        %v1031 = vpow.pop %v1030
        %v1032 = vmul.f32 %v1023, 1.442695
        %v1033 = vpow.pop %v1032
        %v1034 = vmul.f32 %v1024, 1.442695
        %v1035 = vpow.pop %v1034
        %v1036 = vmul.f32 %v1025, 1.442695
        %v1037 = vpow.pop %v1036
        %v1038 = vsel %vm547, %v1027, 0.0
        %1039 = vadd.xlane.f32.xlu0 %v1038
        %v1040 = vpop.xlane.xlu0 %1039
        %v1041 = vsel %vm547, %v1029, 0.0
        %1042 = vadd.xlane.f32.xlu0 %v1041
        %v1043 = vpop.xlane.xlu0 %1042
        %v1044 = vsel %vm547, %v1031, 0.0
        %1045 = vadd.xlane.f32.xlu0 %v1044
        %v1046 = vpop.xlane.xlu0 %1045
        %v1047 = vsel %vm547, %v1033, 0.0
        %1048 = vadd.xlane.f32.xlu0 %v1047
        %v1049 = vpop.xlane.xlu0 %1048
        %v1050 = vsel %vm547, %v1035, 0.0
        %1051 = vadd.xlane.f32.xlu0 %v1050
        %v1052 = vpop.xlane.xlu0 %1051
        %v1053 = vsel %vm547, %v1037, 0.0
        %1054 = vadd.xlane.f32.xlu0 %v1053
        %v1055 = vpop.xlane.xlu0 %1054
        %v1056 = vrcp.pop %v1040
        %v1057 = vrcp.pop %v1043
        %v1058 = vrcp.pop %v1046
        %v1059 = vrcp.pop %v1049
        %v1060 = vrcp.pop %v1052
        %v1061 = vrcp.pop %v1055
        %v1062 = vmul.f32 %v1027, %v1056
        %v1063 = vmul.f32 %v1029, %v1057
        %v1064 = vmul.f32 %v1031, %v1058
        %v1065 = vmul.f32 %v1033, %v1059
        %v1066 = vmul.f32 %v1035, %v1060
        %v1067 = vmul.f32 %v1037, %v1061
        %1068 = vrot.lane.b32.xlu0 %v519, 32
        %v1069 = vpop.permute.xlu0 %1068
        %v1072 = vsel %vm547, %v1062, 0
        %1074 = vmatprep.subr.mxu0 0.0
        %1075 = vmatpush1.msra.mxu0 0.0
        %1076 = vmatprep.subr.mxu0 0.0
        %1077 = vmatpush1.msra.mxu0 0.0
        %1078 = vmatprep.subr.mxu0 0.0
        %1079 = vmatpush1.msra.mxu0 0.0
        %1080 = vmatprep.subr.mxu0 0.0
        %1081 = vmatpush1.msra.mxu0 0.0
        %1082 = vmatprep.subr.mxu0 0.0
        %1083 = vmatpush1.msra.mxu0 0.0
        %1084 = vmatprep.subr.mxu0 0.0
        %1085 = vmatpush1.msra.mxu0 0.0
        %1086 = vmatprep.subr.mxu0 0.0
        %1087 = vmatpush1.msra.mxu0 0.0
        %1088 = vmatprep.subr.mxu0 0.0
        %1089 = vmatpush1.msra.mxu0 0.0
        %1090 = vmatprep.subr.mxu0 0.0
        %1091 = vmatpush1.msra.mxu0 0.0
        %1092 = vmatprep.subr.mxu0 0.0
        %1093 = vmatpush1.msra.mxu0 0.0
        %1094 = vmatprep.subr.mxu0 0.0
        %1095 = vmatpush1.msra.mxu0 0.0
        %1096 = vmatprep.subr.mxu0 0.0
        %1097 = vmatpush1.msra.mxu0 0.0
        %1098 = vmatprep.subr.mxu0 0.0
        %1099 = vmatpush1.msra.mxu0 0.0
        %1100 = vmatprep.subr.mxu0 0.0
        %1101 = vmatpush1.msra.mxu0 0.0
        %1102 = vmatprep.subr.mxu0 0.0
        %1103 = vmatpush1.msra.mxu0 0.0
        %1104 = vmatprep.subr.mxu0 0.0
        %1105 = vmatpush1.msra.mxu0 %v1069
        %1106 = vmatprep.subr.mxu0 0.0
        %1107 = vmatpush2.msra.mxu0 0.0
        %1108 = vmatprep.subr.mxu0 0.0
        %1109 = vmatpush2.msra.mxu0 0.0
        %1110 = vmatprep.subr.mxu0 0.0
        %1111 = vmatpush2.msra.mxu0 0.0
        %1112 = vmatprep.subr.mxu0 0.0
        %1113 = vmatpush2.msra.mxu0 0.0
        %1114 = vmatprep.subr.mxu0 0.0
        %1115 = vmatpush2.msra.mxu0 0.0
        %1116 = vmatprep.subr.mxu0 0.0
        %1117 = vmatpush2.msra.mxu0 0.0
        %1118 = vmatprep.subr.mxu0 0.0
        %1119 = vmatpush2.msra.mxu0 0.0
        %1120 = vmatprep.subr.mxu0 0.0
        %1121 = vmatpush2.msra.mxu0 0.0
        %1122 = vmatprep.subr.mxu0 0.0
        %1123 = vmatpush2.msra.mxu0 0.0
        %1124 = vmatprep.subr.mxu0 0.0
        %1125 = vmatpush2.msra.mxu0 0.0
        %1126 = vmatprep.subr.mxu0 0.0
        %1127 = vmatpush2.msra.mxu0 0.0
        %1128 = vmatprep.subr.mxu0 0.0
        %1129 = vmatpush2.msra.mxu0 0.0
        %1130 = vmatprep.subr.mxu0 0.0
        %1131 = vmatpush2.msra.mxu0 0.0
        %1132 = vmatprep.subr.mxu0 0.0
        %1133 = vmatpush2.msra.mxu0 0.0
        %1134 = vmatprep.subr.mxu0 0.0
        %1135 = vmatpush2.msra.mxu0 0.0
        %1136 = vmatprep.subr.mxu0 0.0
        %1137 = vmatpush2.msra.mxu0 0.0
        %1138 = vmatprep.mubr.f32.mxu0 0.0
        %1139 = vmatmul.mubr.f32.gmra.mxu0 %v1072
        %v1140 = vpop.f32.mrf.mxu0
        %v1141 = vadd.f32 0.0, %v1140
        %v1142 = vpop.f32.mrf.mxu0
        %1143 = vdwg.mxu0
        %1144 = vrot.lane.b32.xlu0 %v531, 32
        %v1145 = vpop.permute.xlu0 %1144
        %v1148 = vsel %vm547, %v1063, 0
        %1150 = vmatprep.subr.mxu0 0.0
        %1151 = vmatpush1.msra.mxu0 0.0
        %1152 = vmatprep.subr.mxu0 0.0
        %1153 = vmatpush1.msra.mxu0 0.0
        %1154 = vmatprep.subr.mxu0 0.0
        %1155 = vmatpush1.msra.mxu0 0.0
        %1156 = vmatprep.subr.mxu0 0.0
        %1157 = vmatpush1.msra.mxu0 0.0
        %1158 = vmatprep.subr.mxu0 0.0
        %1159 = vmatpush1.msra.mxu0 0.0
        %1160 = vmatprep.subr.mxu0 0.0
        %1161 = vmatpush1.msra.mxu0 0.0
        %1162 = vmatprep.subr.mxu0 0.0
        %1163 = vmatpush1.msra.mxu0 0.0
        %1164 = vmatprep.subr.mxu0 0.0
        %1165 = vmatpush1.msra.mxu0 0.0
        %1166 = vmatprep.subr.mxu0 0.0
        %1167 = vmatpush1.msra.mxu0 0.0
        %1168 = vmatprep.subr.mxu0 0.0
        %1169 = vmatpush1.msra.mxu0 0.0
        %1170 = vmatprep.subr.mxu0 0.0
        %1171 = vmatpush1.msra.mxu0 0.0
        %1172 = vmatprep.subr.mxu0 0.0
        %1173 = vmatpush1.msra.mxu0 0.0
        %1174 = vmatprep.subr.mxu0 0.0
        %1175 = vmatpush1.msra.mxu0 0.0
        %1176 = vmatprep.subr.mxu0 0.0
        %1177 = vmatpush1.msra.mxu0 0.0
        %1178 = vmatprep.subr.mxu0 0.0
        %1179 = vmatpush1.msra.mxu0 0.0
        %1180 = vmatprep.subr.mxu0 0.0
        %1181 = vmatpush1.msra.mxu0 %v1145
        %1182 = vmatprep.subr.mxu0 0.0
        %1183 = vmatpush2.msra.mxu0 0.0
        %1184 = vmatprep.subr.mxu0 0.0
        %1185 = vmatpush2.msra.mxu0 0.0
        %1186 = vmatprep.subr.mxu0 0.0
        %1187 = vmatpush2.msra.mxu0 0.0
        %1188 = vmatprep.subr.mxu0 0.0
        %1189 = vmatpush2.msra.mxu0 0.0
        %1190 = vmatprep.subr.mxu0 0.0
        %1191 = vmatpush2.msra.mxu0 0.0
        %1192 = vmatprep.subr.mxu0 0.0
        %1193 = vmatpush2.msra.mxu0 0.0
        %1194 = vmatprep.subr.mxu0 0.0
        %1195 = vmatpush2.msra.mxu0 0.0
        %1196 = vmatprep.subr.mxu0 0.0
        %1197 = vmatpush2.msra.mxu0 0.0
        %1198 = vmatprep.subr.mxu0 0.0
        %1199 = vmatpush2.msra.mxu0 0.0
        %1200 = vmatprep.subr.mxu0 0.0
        %1201 = vmatpush2.msra.mxu0 0.0
        %1202 = vmatprep.subr.mxu0 0.0
        %1203 = vmatpush2.msra.mxu0 0.0
        %1204 = vmatprep.subr.mxu0 0.0
        %1205 = vmatpush2.msra.mxu0 0.0
        %1206 = vmatprep.subr.mxu0 0.0
        %1207 = vmatpush2.msra.mxu0 0.0
        %1208 = vmatprep.subr.mxu0 0.0
        %1209 = vmatpush2.msra.mxu0 0.0
        %1210 = vmatprep.subr.mxu0 0.0
        %1211 = vmatpush2.msra.mxu0 0.0
        %1212 = vmatprep.subr.mxu0 0.0
        %1213 = vmatpush2.msra.mxu0 0.0
        %1214 = vmatprep.mubr.f32.mxu0 0.0
        %1215 = vmatmul.mubr.f32.gmra.mxu0 %v1148
        %v1216 = vpop.f32.mrf.mxu0
        %v1217 = vadd.f32 0.0, %v1216
        %v1218 = vpop.f32.mrf.mxu0
        %1219 = vdwg.mxu0
        %1220 = vrot.lane.b32.xlu0 %v533, 32
        %v1221 = vpop.permute.xlu0 %1220
        %v1224 = vsel %vm547, %v1064, 0
        %1226 = vmatprep.subr.mxu0 0.0
        %1227 = vmatpush1.msra.mxu0 0.0
        %1228 = vmatprep.subr.mxu0 0.0
        %1229 = vmatpush1.msra.mxu0 0.0
        %1230 = vmatprep.subr.mxu0 0.0
        %1231 = vmatpush1.msra.mxu0 0.0
        %1232 = vmatprep.subr.mxu0 0.0
        %1233 = vmatpush1.msra.mxu0 0.0
        %1234 = vmatprep.subr.mxu0 0.0
        %1235 = vmatpush1.msra.mxu0 0.0
        %1236 = vmatprep.subr.mxu0 0.0
        %1237 = vmatpush1.msra.mxu0 0.0
        %1238 = vmatprep.subr.mxu0 0.0
        %1239 = vmatpush1.msra.mxu0 0.0
        %1240 = vmatprep.subr.mxu0 0.0
        %1241 = vmatpush1.msra.mxu0 0.0
        %1242 = vmatprep.subr.mxu0 0.0
        %1243 = vmatpush1.msra.mxu0 0.0
        %1244 = vmatprep.subr.mxu0 0.0
        %1245 = vmatpush1.msra.mxu0 0.0
        %1246 = vmatprep.subr.mxu0 0.0
        %1247 = vmatpush1.msra.mxu0 0.0
        %1248 = vmatprep.subr.mxu0 0.0
        %1249 = vmatpush1.msra.mxu0 0.0
        %1250 = vmatprep.subr.mxu0 0.0
        %1251 = vmatpush1.msra.mxu0 0.0
        %1252 = vmatprep.subr.mxu0 0.0
        %1253 = vmatpush1.msra.mxu0 0.0
        %1254 = vmatprep.subr.mxu0 0.0
        %1255 = vmatpush1.msra.mxu0 0.0
        %1256 = vmatprep.subr.mxu0 0.0
        %1257 = vmatpush1.msra.mxu0 %v1221
        %1258 = vmatprep.subr.mxu0 0.0
        %1259 = vmatpush2.msra.mxu0 0.0
        %1260 = vmatprep.subr.mxu0 0.0
        %1261 = vmatpush2.msra.mxu0 0.0
        %1262 = vmatprep.subr.mxu0 0.0
        %1263 = vmatpush2.msra.mxu0 0.0
        %1264 = vmatprep.subr.mxu0 0.0
        %1265 = vmatpush2.msra.mxu0 0.0
        %1266 = vmatprep.subr.mxu0 0.0
        %1267 = vmatpush2.msra.mxu0 0.0
        %1268 = vmatprep.subr.mxu0 0.0
        %1269 = vmatpush2.msra.mxu0 0.0
        %1270 = vmatprep.subr.mxu0 0.0
        %1271 = vmatpush2.msra.mxu0 0.0
        %1272 = vmatprep.subr.mxu0 0.0
        %1273 = vmatpush2.msra.mxu0 0.0
        %1274 = vmatprep.subr.mxu0 0.0
        %1275 = vmatpush2.msra.mxu0 0.0
        %1276 = vmatprep.subr.mxu0 0.0
        %1277 = vmatpush2.msra.mxu0 0.0
        %1278 = vmatprep.subr.mxu0 0.0
        %1279 = vmatpush2.msra.mxu0 0.0
        %1280 = vmatprep.subr.mxu0 0.0
        %1281 = vmatpush2.msra.mxu0 0.0
        %1282 = vmatprep.subr.mxu0 0.0
        %1283 = vmatpush2.msra.mxu0 0.0
        %1284 = vmatprep.subr.mxu0 0.0
        %1285 = vmatpush2.msra.mxu0 0.0
        %1286 = vmatprep.subr.mxu0 0.0
        %1287 = vmatpush2.msra.mxu0 0.0
        %1288 = vmatprep.subr.mxu0 0.0
        %1289 = vmatpush2.msra.mxu0 0.0
        %1290 = vmatprep.mubr.f32.mxu0 0.0
        %1291 = vmatmul.mubr.f32.gmra.mxu0 %v1224
        %v1292 = vpop.f32.mrf.mxu0
        %v1293 = vadd.f32 0.0, %v1292
        %v1294 = vpop.f32.mrf.mxu0
        %1295 = vdwg.mxu0
        %1296 = vrot.lane.b32.xlu0 %v535, 32
        %v1297 = vpop.permute.xlu0 %1296
        %v1300 = vsel %vm547, %v1065, 0
        %1302 = vmatprep.subr.mxu0 0.0
        %1303 = vmatpush1.msra.mxu0 0.0
        %1304 = vmatprep.subr.mxu0 0.0
        %1305 = vmatpush1.msra.mxu0 0.0
        %1306 = vmatprep.subr.mxu0 0.0
        %1307 = vmatpush1.msra.mxu0 0.0
        %1308 = vmatprep.subr.mxu0 0.0
        %1309 = vmatpush1.msra.mxu0 0.0
        %1310 = vmatprep.subr.mxu0 0.0
        %1311 = vmatpush1.msra.mxu0 0.0
        %1312 = vmatprep.subr.mxu0 0.0
        %1313 = vmatpush1.msra.mxu0 0.0
        %1314 = vmatprep.subr.mxu0 0.0
        %1315 = vmatpush1.msra.mxu0 0.0
        %1316 = vmatprep.subr.mxu0 0.0
        %1317 = vmatpush1.msra.mxu0 0.0
        %1318 = vmatprep.subr.mxu0 0.0
        %1319 = vmatpush1.msra.mxu0 0.0
        %1320 = vmatprep.subr.mxu0 0.0
        %1321 = vmatpush1.msra.mxu0 0.0
        %1322 = vmatprep.subr.mxu0 0.0
        %1323 = vmatpush1.msra.mxu0 0.0
        %1324 = vmatprep.subr.mxu0 0.0
        %1325 = vmatpush1.msra.mxu0 0.0
        %1326 = vmatprep.subr.mxu0 0.0
        %1327 = vmatpush1.msra.mxu0 0.0
        %1328 = vmatprep.subr.mxu0 0.0
        %1329 = vmatpush1.msra.mxu0 0.0
        %1330 = vmatprep.subr.mxu0 0.0
        %1331 = vmatpush1.msra.mxu0 0.0
        %1332 = vmatprep.subr.mxu0 0.0
        %1333 = vmatpush1.msra.mxu0 %v1297
        %1334 = vmatprep.subr.mxu0 0.0
        %1335 = vmatpush2.msra.mxu0 0.0
        %1336 = vmatprep.subr.mxu0 0.0
        %1337 = vmatpush2.msra.mxu0 0.0
        %1338 = vmatprep.subr.mxu0 0.0
        %1339 = vmatpush2.msra.mxu0 0.0
        %1340 = vmatprep.subr.mxu0 0.0
        %1341 = vmatpush2.msra.mxu0 0.0
        %1342 = vmatprep.subr.mxu0 0.0
        %1343 = vmatpush2.msra.mxu0 0.0
        %1344 = vmatprep.subr.mxu0 0.0
        %1345 = vmatpush2.msra.mxu0 0.0
        %1346 = vmatprep.subr.mxu0 0.0
        %1347 = vmatpush2.msra.mxu0 0.0
        %1348 = vmatprep.subr.mxu0 0.0
        %1349 = vmatpush2.msra.mxu0 0.0
        %1350 = vmatprep.subr.mxu0 0.0
        %1351 = vmatpush2.msra.mxu0 0.0
        %1352 = vmatprep.subr.mxu0 0.0
        %1353 = vmatpush2.msra.mxu0 0.0
        %1354 = vmatprep.subr.mxu0 0.0
        %1355 = vmatpush2.msra.mxu0 0.0
        %1356 = vmatprep.subr.mxu0 0.0
        %1357 = vmatpush2.msra.mxu0 0.0
        %1358 = vmatprep.subr.mxu0 0.0
        %1359 = vmatpush2.msra.mxu0 0.0
        %1360 = vmatprep.subr.mxu0 0.0
        %1361 = vmatpush2.msra.mxu0 0.0
        %1362 = vmatprep.subr.mxu0 0.0
        %1363 = vmatpush2.msra.mxu0 0.0
        %1364 = vmatprep.subr.mxu0 0.0
        %1365 = vmatpush2.msra.mxu0 0.0
        %1366 = vmatprep.mubr.f32.mxu0 0.0
        %1367 = vmatmul.mubr.f32.gmra.mxu0 %v1300
        %v1368 = vpop.f32.mrf.mxu0
        %v1369 = vadd.f32 0.0, %v1368
        %v1370 = vpop.f32.mrf.mxu0
        %1371 = vdwg.mxu0
        %1372 = vrot.lane.b32.xlu0 %v542, 32
        %v1373 = vpop.permute.xlu0 %1372
        %v1376 = vsel %vm547, %v1066, 0
        %1378 = vmatprep.subr.mxu0 0.0
        %1379 = vmatpush1.msra.mxu0 0.0
        %1380 = vmatprep.subr.mxu0 0.0
        %1381 = vmatpush1.msra.mxu0 0.0
        %1382 = vmatprep.subr.mxu0 0.0
        %1383 = vmatpush1.msra.mxu0 0.0
        %1384 = vmatprep.subr.mxu0 0.0
        %1385 = vmatpush1.msra.mxu0 0.0
        %1386 = vmatprep.subr.mxu0 0.0
        %1387 = vmatpush1.msra.mxu0 0.0
        %1388 = vmatprep.subr.mxu0 0.0
        %1389 = vmatpush1.msra.mxu0 0.0
        %1390 = vmatprep.subr.mxu0 0.0
        %1391 = vmatpush1.msra.mxu0 0.0
        %1392 = vmatprep.subr.mxu0 0.0
        %1393 = vmatpush1.msra.mxu0 0.0
        %1394 = vmatprep.subr.mxu0 0.0
        %1395 = vmatpush1.msra.mxu0 0.0
        %1396 = vmatprep.subr.mxu0 0.0
        %1397 = vmatpush1.msra.mxu0 0.0
        %1398 = vmatprep.subr.mxu0 0.0
        %1399 = vmatpush1.msra.mxu0 0.0
        %1400 = vmatprep.subr.mxu0 0.0
        %1401 = vmatpush1.msra.mxu0 0.0
        %1402 = vmatprep.subr.mxu0 0.0
        %1403 = vmatpush1.msra.mxu0 0.0
        %1404 = vmatprep.subr.mxu0 0.0
        %1405 = vmatpush1.msra.mxu0 0.0
        %1406 = vmatprep.subr.mxu0 0.0
        %1407 = vmatpush1.msra.mxu0 0.0
        %1408 = vmatprep.subr.mxu0 0.0
        %1409 = vmatpush1.msra.mxu0 %v1373
        %1410 = vmatprep.subr.mxu0 0.0
        %1411 = vmatpush2.msra.mxu0 0.0
        %1412 = vmatprep.subr.mxu0 0.0
        %1413 = vmatpush2.msra.mxu0 0.0
        %1414 = vmatprep.subr.mxu0 0.0
        %1415 = vmatpush2.msra.mxu0 0.0
        %1416 = vmatprep.subr.mxu0 0.0
        %1417 = vmatpush2.msra.mxu0 0.0
        %1418 = vmatprep.subr.mxu0 0.0
        %1419 = vmatpush2.msra.mxu0 0.0
        %1420 = vmatprep.subr.mxu0 0.0
        %1421 = vmatpush2.msra.mxu0 0.0
        %1422 = vmatprep.subr.mxu0 0.0
        %1423 = vmatpush2.msra.mxu0 0.0
        %1424 = vmatprep.subr.mxu0 0.0
        %1425 = vmatpush2.msra.mxu0 0.0
        %1426 = vmatprep.subr.mxu0 0.0
        %1427 = vmatpush2.msra.mxu0 0.0
        %1428 = vmatprep.subr.mxu0 0.0
        %1429 = vmatpush2.msra.mxu0 0.0
        %1430 = vmatprep.subr.mxu0 0.0
        %1431 = vmatpush2.msra.mxu0 0.0
        %1432 = vmatprep.subr.mxu0 0.0
        %1433 = vmatpush2.msra.mxu0 0.0
        %1434 = vmatprep.subr.mxu0 0.0
        %1435 = vmatpush2.msra.mxu0 0.0
        %1436 = vmatprep.subr.mxu0 0.0
        %1437 = vmatpush2.msra.mxu0 0.0
        %1438 = vmatprep.subr.mxu0 0.0
        %1439 = vmatpush2.msra.mxu0 0.0
        %1440 = vmatprep.subr.mxu0 0.0
        %1441 = vmatpush2.msra.mxu0 0.0
        %1442 = vmatprep.mubr.f32.mxu0 0.0
        %1443 = vmatmul.mubr.f32.gmra.mxu0 %v1376
        %v1444 = vpop.f32.mrf.mxu0
        %v1445 = vadd.f32 0.0, %v1444
        %v1446 = vpop.f32.mrf.mxu0
        %1447 = vdwg.mxu0
        %1448 = vrot.lane.b32.xlu0 %v544, 32
        %v1449 = vpop.permute.xlu0 %1448
        %v1452 = vsel %vm547, %v1067, 0
        %1454 = vmatprep.subr.mxu0 0.0
        %1455 = vmatpush1.msra.mxu0 0.0
        %1456 = vmatprep.subr.mxu0 0.0
        %1457 = vmatpush1.msra.mxu0 0.0
        %1458 = vmatprep.subr.mxu0 0.0
        %1459 = vmatpush1.msra.mxu0 0.0
        %1460 = vmatprep.subr.mxu0 0.0
        %1461 = vmatpush1.msra.mxu0 0.0
        %1462 = vmatprep.subr.mxu0 0.0
        %1463 = vmatpush1.msra.mxu0 0.0
        %1464 = vmatprep.subr.mxu0 0.0
        %1465 = vmatpush1.msra.mxu0 0.0
        %1466 = vmatprep.subr.mxu0 0.0
        %1467 = vmatpush1.msra.mxu0 0.0
        %1468 = vmatprep.subr.mxu0 0.0
        %1469 = vmatpush1.msra.mxu0 0.0
        %1470 = vmatprep.subr.mxu0 0.0
        %1471 = vmatpush1.msra.mxu0 0.0
        %1472 = vmatprep.subr.mxu0 0.0
        %1473 = vmatpush1.msra.mxu0 0.0
        %1474 = vmatprep.subr.mxu0 0.0
        %1475 = vmatpush1.msra.mxu0 0.0
        %1476 = vmatprep.subr.mxu0 0.0
        %1477 = vmatpush1.msra.mxu0 0.0
        %1478 = vmatprep.subr.mxu0 0.0
        %1479 = vmatpush1.msra.mxu0 0.0
        %1480 = vmatprep.subr.mxu0 0.0
        %1481 = vmatpush1.msra.mxu0 0.0
        %1482 = vmatprep.subr.mxu0 0.0
        %1483 = vmatpush1.msra.mxu0 0.0
        %1484 = vmatprep.subr.mxu0 0.0
        %1485 = vmatpush1.msra.mxu0 %v1449
        %1486 = vmatprep.subr.mxu0 0.0
        %1487 = vmatpush2.msra.mxu0 0.0
        %1488 = vmatprep.subr.mxu0 0.0
        %1489 = vmatpush2.msra.mxu0 0.0
        %1490 = vmatprep.subr.mxu0 0.0
        %1491 = vmatpush2.msra.mxu0 0.0
        %1492 = vmatprep.subr.mxu0 0.0
        %1493 = vmatpush2.msra.mxu0 0.0
        %1494 = vmatprep.subr.mxu0 0.0
        %1495 = vmatpush2.msra.mxu0 0.0
        %1496 = vmatprep.subr.mxu0 0.0
        %1497 = vmatpush2.msra.mxu0 0.0
        %1498 = vmatprep.subr.mxu0 0.0
        %1499 = vmatpush2.msra.mxu0 0.0
        %1500 = vmatprep.subr.mxu0 0.0
        %1501 = vmatpush2.msra.mxu0 0.0
        %1502 = vmatprep.subr.mxu0 0.0
        %1503 = vmatpush2.msra.mxu0 0.0
        %1504 = vmatprep.subr.mxu0 0.0
        %1505 = vmatpush2.msra.mxu0 0.0
        %1506 = vmatprep.subr.mxu0 0.0
        %1507 = vmatpush2.msra.mxu0 0.0
        %1508 = vmatprep.subr.mxu0 0.0
        %1509 = vmatpush2.msra.mxu0 0.0
        %1510 = vmatprep.subr.mxu0 0.0
        %1511 = vmatpush2.msra.mxu0 0.0
        %1512 = vmatprep.subr.mxu0 0.0
        %1513 = vmatpush2.msra.mxu0 0.0
        %1514 = vmatprep.subr.mxu0 0.0
        %1515 = vmatpush2.msra.mxu0 0.0
        %1516 = vmatprep.subr.mxu0 0.0
        %1517 = vmatpush2.msra.mxu0 0.0
        %1518 = vmatprep.mubr.f32.mxu0 0.0
        %1519 = vmatmul.mubr.f32.gmra.mxu0 %v1452
        %v1520 = vpop.f32.mrf.mxu0
        %v1521 = vadd.f32 0.0, %v1520
        %v1522 = vpop.f32.mrf.mxu0
        %1523 = vdwg.mxu0
        %1525 = vrot.lane.b32.xlu0 %v1217, 8
        %v1526 = vpop.permute.xlu0 %1525
        %1529 = vrot.lane.b32.xlu0 %v1293, 16
        %v1530 = vpop.permute.xlu0 %1529
        %1533 = vrot.lane.b32.xlu0 %v1369, 24
        %v1534 = vpop.permute.xlu0 %1533
        %1537 = vrot.lane.b32.xlu0 %v1445, 32
        %v1538 = vpop.permute.xlu0 %1537
        %1541 = vrot.lane.b32.xlu0 %v1521, 40
        %v1542 = vpop.permute.xlu0 %1541
        %v1544 = vsel %vm547, %v1141, %v1526
        %vm1545 = vcmask 130048
        %v1546 = vsel %vm1545, %v1544, %v1530
        %vm1547 = vcmask 195584
        %v1548 = vsel %vm1547, %v1546, %v1534
        %v1549 = vsel %vm412, %v1548, %v1538
        %vm1550 = vcmask 326656
        %v1551 = vsel %vm1550, %v1549, %v1542
        %v1552 = vld [vmem:[%s4] sm:$0xff]
        %v1553 = vld [vmem:[%s4 + $0x8] sm:$0xff]
        %v1554 = vld [vmem:[%s4 + $0x10] sm:$0xff]
        %v1555 = vld [vmem:[%s4 + $0x18] sm:$0xff]
        %v1556 = vld [vmem:[%s4 + $0x20] sm:$0xff]
        %v1557 = vld [vmem:[%s4 + $0x28] sm:$0xff]
        %v1558 = vld [vmem:[%s5] sm:$0x1]
        %v1560 = vlaneseq
        %v1561 = vshrl.u32 %v1560, 7
        %v1562 = vsub.s32 0, %v1561
        %v1563 = vrot.slane %v1558, %v1562
        %vm1565 = vcmask 392192
        %v1567 = vsel %vm1565, %v1551, 0
        %1569 = vmatprep.subr.mxu0 0.0
        %1570 = vmatpush1.msra.mxu0 0.0
        %1571 = vmatprep.subr.mxu0 0.0
        %1572 = vmatpush1.msra.mxu0 0.0
        %1573 = vmatprep.subr.mxu0 0.0
        %1574 = vmatpush1.msra.mxu0 0.0
        %1575 = vmatprep.subr.mxu0 0.0
        %1576 = vmatpush1.msra.mxu0 0.0
        %1577 = vmatprep.subr.mxu0 0.0
        %1578 = vmatpush1.msra.mxu0 0.0
        %1579 = vmatprep.subr.mxu0 0.0
        %1580 = vmatpush1.msra.mxu0 0.0
        %1581 = vmatprep.subr.mxu0 0.0
        %1582 = vmatpush1.msra.mxu0 0.0
        %1583 = vmatprep.subr.mxu0 0.0
        %1584 = vmatpush1.msra.mxu0 0.0
        %1585 = vmatprep.subr.mxu0 0.0
        %1586 = vmatpush1.msra.mxu0 0.0
        %1587 = vmatprep.subr.mxu0 0.0
        %1588 = vmatpush1.msra.mxu0 0.0
        %1589 = vmatprep.subr.mxu0 0.0
        %1590 = vmatpush1.msra.mxu0 %v1557
        %1591 = vmatprep.subr.mxu0 0.0
        %1592 = vmatpush1.msra.mxu0 %v1556
        %1593 = vmatprep.subr.mxu0 0.0
        %1594 = vmatpush1.msra.mxu0 %v1555
        %1595 = vmatprep.subr.mxu0 0.0
        %1596 = vmatpush1.msra.mxu0 %v1554
        %1597 = vmatprep.subr.mxu0 0.0
        %1598 = vmatpush1.msra.mxu0 %v1553
        %1599 = vmatprep.subr.mxu0 0.0
        %1600 = vmatpush1.msra.mxu0 %v1552
        %1601 = vmatprep.subr.mxu0 0.0
        %1602 = vmatpush2.msra.mxu0 0.0
        %1603 = vmatprep.subr.mxu0 0.0
        %1604 = vmatpush2.msra.mxu0 0.0
        %1605 = vmatprep.subr.mxu0 0.0
        %1606 = vmatpush2.msra.mxu0 0.0
        %1607 = vmatprep.subr.mxu0 0.0
        %1608 = vmatpush2.msra.mxu0 0.0
        %1609 = vmatprep.subr.mxu0 0.0
        %1610 = vmatpush2.msra.mxu0 0.0
        %1611 = vmatprep.subr.mxu0 0.0
        %1612 = vmatpush2.msra.mxu0 0.0
        %1613 = vmatprep.subr.mxu0 0.0
        %1614 = vmatpush2.msra.mxu0 0.0
        %1615 = vmatprep.subr.mxu0 0.0
        %1616 = vmatpush2.msra.mxu0 0.0
        %1617 = vmatprep.subr.mxu0 0.0
        %1618 = vmatpush2.msra.mxu0 0.0
        %1619 = vmatprep.subr.mxu0 0.0
        %1620 = vmatpush2.msra.mxu0 0.0
        %1621 = vmatprep.subr.mxu0 0.0
        %1622 = vmatpush2.msra.mxu0 0.0
        %1623 = vmatprep.subr.mxu0 0.0
        %1624 = vmatpush2.msra.mxu0 0.0
        %1625 = vmatprep.subr.mxu0 0.0
        %1626 = vmatpush2.msra.mxu0 0.0
        %1627 = vmatprep.subr.mxu0 0.0
        %1628 = vmatpush2.msra.mxu0 0.0
        %1629 = vmatprep.subr.mxu0 0.0
        %1630 = vmatpush2.msra.mxu0 0.0
        %1631 = vmatprep.subr.mxu0 0.0
        %1632 = vmatpush2.msra.mxu0 0.0
        %1633 = vmatprep.mubr.f32.mxu0 0.0
        %1634 = vmatmul.mubr.f32.gmra.mxu0 %v1567
        %v1635 = vpop.f32.mrf.mxu0
        %v1636 = vadd.f32 %v1563, %v1635
        %v1637 = vpop.f32.mrf.mxu0
        %1638 = vdwg.mxu0
        %v1639 = vadd.f32 %v409, %v1636
        %v1640 = vld [vmem:[%s6] sm:$0x1]
        %v1641 = vld [vmem:[%s7] sm:$0x1]
        %v1642 = vsel %vm412, %v1639, 0.0
        %1643 = vadd.xlane.f32.xlu0 %v1642
        %v1644 = vpop.xlane.xlu0 %1643
        %v1645 = vmul.f32 %v1644, %v416
        %v1646 = vsub.f32 %v1639, %v1645
        %v1647 = vmul.f32 %v1646, %v1646
        %v1648 = vsel %vm412, %v1647, 0.0
        %1649 = vadd.xlane.f32.xlu0 %v1648
        %v1650 = vpop.xlane.xlu0 %1649
        %v1651 = vmul.f32 %v1650, %v416
        %v1652 = vadd.f32 %v1651, 1e-05
        %v1653 = vrsqrt.pop %v1652
        %v1654 = vmul.f32 %v1646, %v1653
        %v1656 = vlaneseq
        %v1657 = vshrl.u32 %v1656, 7
        %v1658 = vsub.s32 0, %v1657
        %v1659 = vrot.slane %v1640, %v1658
        %v1661 = vmul.f32 %v1654, %v1659
        %v1663 = vlaneseq
        %v1664 = vshrl.u32 %v1663, 7
        %v1665 = vsub.s32 0, %v1664
        %v1666 = vrot.slane %v1641, %v1665
        %v1668 = vadd.f32 %v1661, %v1666
        %v1669 = vld [vmem:[%s8] sm:$0xff]
        %v1670 = vld [vmem:[%s8 + $0x8] sm:$0xff]
        %v1671 = vld [vmem:[%s8 + $0x10] sm:$0xff]
        %v1672 = vld [vmem:[%s8 + $0x18] sm:$0xff]
        %v1673 = vld [vmem:[%s9] sm:$0x1]
        %v1675 = vlaneseq
        %v1676 = vshrl.u32 %v1675, 7
        %v1677 = vsub.s32 0, %v1676
        %v1678 = vrot.slane %v1673, %v1677
        %v1681 = vsel %vm412, %v1668, 0
        %1683 = vmatprep.subr.mxu0 0.0
        %1684 = vmatpush1.msra.mxu0 0.0
        %1685 = vmatprep.subr.mxu0 0.0
        %1686 = vmatpush1.msra.mxu0 0.0
        %1687 = vmatprep.subr.mxu0 0.0
        %1688 = vmatpush1.msra.mxu0 0.0
        %1689 = vmatprep.subr.mxu0 0.0
        %1690 = vmatpush1.msra.mxu0 0.0
        %1691 = vmatprep.subr.mxu0 0.0
        %1692 = vmatpush1.msra.mxu0 0.0
        %1693 = vmatprep.subr.mxu0 0.0
        %1694 = vmatpush1.msra.mxu0 0.0
        %1695 = vmatprep.subr.mxu0 0.0
        %1696 = vmatpush1.msra.mxu0 0.0
        %1697 = vmatprep.subr.mxu0 0.0
        %1698 = vmatpush1.msra.mxu0 0.0
        %1699 = vmatprep.subr.mxu0 0.0
        %1700 = vmatpush1.msra.mxu0 0.0
        %1701 = vmatprep.subr.mxu0 0.0
        %1702 = vmatpush1.msra.mxu0 0.0
        %1703 = vmatprep.subr.mxu0 0.0
        %1704 = vmatpush1.msra.mxu0 0.0
        %1705 = vmatprep.subr.mxu0 0.0
        %1706 = vmatpush1.msra.mxu0 0.0
        %1707 = vmatprep.subr.mxu0 0.0
        %1708 = vmatpush1.msra.mxu0 %v1672
        %1709 = vmatprep.subr.mxu0 0.0
        %1710 = vmatpush1.msra.mxu0 %v1671
        %1711 = vmatprep.subr.mxu0 0.0
        %1712 = vmatpush1.msra.mxu0 %v1670
        %1713 = vmatprep.subr.mxu0 0.0
        %1714 = vmatpush1.msra.mxu0 %v1669
        %1715 = vmatprep.subr.mxu0 0.0
        %1716 = vmatpush2.msra.mxu0 0.0
        %1717 = vmatprep.subr.mxu0 0.0
        %1718 = vmatpush2.msra.mxu0 0.0
        %1719 = vmatprep.subr.mxu0 0.0
        %1720 = vmatpush2.msra.mxu0 0.0
        %1721 = vmatprep.subr.mxu0 0.0
        %1722 = vmatpush2.msra.mxu0 0.0
        %1723 = vmatprep.subr.mxu0 0.0
        %1724 = vmatpush2.msra.mxu0 0.0
        %1725 = vmatprep.subr.mxu0 0.0
        %1726 = vmatpush2.msra.mxu0 0.0
        %1727 = vmatprep.subr.mxu0 0.0
        %1728 = vmatpush2.msra.mxu0 0.0
        %1729 = vmatprep.subr.mxu0 0.0
        %1730 = vmatpush2.msra.mxu0 0.0
        %1731 = vmatprep.subr.mxu0 0.0
        %1732 = vmatpush2.msra.mxu0 0.0
        %1733 = vmatprep.subr.mxu0 0.0
        %1734 = vmatpush2.msra.mxu0 0.0
        %1735 = vmatprep.subr.mxu0 0.0
        %1736 = vmatpush2.msra.mxu0 0.0
        %1737 = vmatprep.subr.mxu0 0.0
        %1738 = vmatpush2.msra.mxu0 0.0
        %1739 = vmatprep.subr.mxu0 0.0
        %1740 = vmatpush2.msra.mxu0 0.0
        %1741 = vmatprep.subr.mxu0 0.0
        %1742 = vmatpush2.msra.mxu0 0.0
        %1743 = vmatprep.subr.mxu0 0.0
        %1744 = vmatpush2.msra.mxu0 0.0
        %1745 = vmatprep.subr.mxu0 0.0
        %1746 = vmatpush2.msra.mxu0 0.0
        %1747 = vmatprep.mubr.f32.mxu0 0.0
        %1748 = vmatmul.mubr.f32.gmra.mxu0 %v1681
        %v1749 = vpop.f32.mrf.mxu0
        %v1750 = vadd.f32 %v1678, %v1749
        %v1751 = vpop.f32.mrf.mxu0
        %1752 = vdwg.mxu0
        %v1753 = vmax.f32 %v1750, 0.0
        %v1754 = vld [vmem:[%s10] sm:$0xff]
        %v1755 = vld [vmem:[%s10 + $0x8] sm:$0xff]
        %v1756 = vld [vmem:[%s10 + $0x10] sm:$0xff]
        %v1757 = vld [vmem:[%s10 + $0x18] sm:$0xff]
        %v1758 = vld [vmem:[%s10 + $0x20] sm:$0xff]
        %v1759 = vld [vmem:[%s10 + $0x28] sm:$0xff]
        %v1760 = vld [vmem:[%s10 + $0x30] sm:$0xff]
        %v1761 = vld [vmem:[%s10 + $0x38] sm:$0xff]
        %v1762 = vld [vmem:[%s10 + $0x40] sm:$0xff]
        %v1763 = vld [vmem:[%s10 + $0x48] sm:$0xff]
        %v1764 = vld [vmem:[%s10 + $0x50] sm:$0xff]
        %v1765 = vld [vmem:[%s10 + $0x58] sm:$0xff]
        %v1766 = vld [vmem:[%s10 + $0x60] sm:$0xff]
        %v1767 = vld [vmem:[%s10 + $0x68] sm:$0xff]
        %v1768 = vld [vmem:[%s10 + $0x70] sm:$0xff]
        %v1769 = vld [vmem:[%s10 + $0x78] sm:$0xff]
        %v1770 = vld [vmem:[%s11] sm:$0x1]
        %v1772 = vlaneseq
        %v1773 = vshrl.u32 %v1772, 7
        %v1774 = vsub.s32 0, %v1773
        %v1775 = vrot.slane %v1770, %v1774
        %1777 = vmatprep.subr.mxu0 0.0
        %1778 = vmatpush1.msra.mxu0 %v1769
        %1779 = vmatprep.subr.mxu0 0.0
        %1780 = vmatpush1.msra.mxu0 %v1768
        %1781 = vmatprep.subr.mxu0 0.0
        %1782 = vmatpush1.msra.mxu0 %v1767
        %1783 = vmatprep.subr.mxu0 0.0
        %1784 = vmatpush1.msra.mxu0 %v1766
        %1785 = vmatprep.subr.mxu0 0.0
        %1786 = vmatpush1.msra.mxu0 %v1765
        %1787 = vmatprep.subr.mxu0 0.0
        %1788 = vmatpush1.msra.mxu0 %v1764
        %1789 = vmatprep.subr.mxu0 0.0
        %1790 = vmatpush1.msra.mxu0 %v1763
        %1791 = vmatprep.subr.mxu0 0.0
        %1792 = vmatpush1.msra.mxu0 %v1762
        %1793 = vmatprep.subr.mxu0 0.0
        %1794 = vmatpush1.msra.mxu0 %v1761
        %1795 = vmatprep.subr.mxu0 0.0
        %1796 = vmatpush1.msra.mxu0 %v1760
        %1797 = vmatprep.subr.mxu0 0.0
        %1798 = vmatpush1.msra.mxu0 %v1759
        %1799 = vmatprep.subr.mxu0 0.0
        %1800 = vmatpush1.msra.mxu0 %v1758
        %1801 = vmatprep.subr.mxu0 0.0
        %1802 = vmatpush1.msra.mxu0 %v1757
        %1803 = vmatprep.subr.mxu0 0.0
        %1804 = vmatpush1.msra.mxu0 %v1756
        %1805 = vmatprep.subr.mxu0 0.0
        %1806 = vmatpush1.msra.mxu0 %v1755
        %1807 = vmatprep.subr.mxu0 0.0
        %1808 = vmatpush1.msra.mxu0 %v1754
        %1809 = vmatprep.subr.mxu0 0.0
        %1810 = vmatpush2.msra.mxu0 0.0
        %1811 = vmatprep.subr.mxu0 0.0
        %1812 = vmatpush2.msra.mxu0 0.0
        %1813 = vmatprep.subr.mxu0 0.0
        %1814 = vmatpush2.msra.mxu0 0.0
        %1815 = vmatprep.subr.mxu0 0.0
        %1816 = vmatpush2.msra.mxu0 0.0
        %1817 = vmatprep.subr.mxu0 0.0
        %1818 = vmatpush2.msra.mxu0 0.0
        %1819 = vmatprep.subr.mxu0 0.0
        %1820 = vmatpush2.msra.mxu0 0.0
        %1821 = vmatprep.subr.mxu0 0.0
        %1822 = vmatpush2.msra.mxu0 0.0
        %1823 = vmatprep.subr.mxu0 0.0
        %1824 = vmatpush2.msra.mxu0 0.0
        %1825 = vmatprep.subr.mxu0 0.0
        %1826 = vmatpush2.msra.mxu0 0.0
        %1827 = vmatprep.subr.mxu0 0.0
        %1828 = vmatpush2.msra.mxu0 0.0
        %1829 = vmatprep.subr.mxu0 0.0
        %1830 = vmatpush2.msra.mxu0 0.0
        %1831 = vmatprep.subr.mxu0 0.0
        %1832 = vmatpush2.msra.mxu0 0.0
        %1833 = vmatprep.subr.mxu0 0.0
        %1834 = vmatpush2.msra.mxu0 0.0
        %1835 = vmatprep.subr.mxu0 0.0
        %1836 = vmatpush2.msra.mxu0 0.0
        %1837 = vmatprep.subr.mxu0 0.0
        %1838 = vmatpush2.msra.mxu0 0.0
        %1839 = vmatprep.subr.mxu0 0.0
        %1840 = vmatpush2.msra.mxu0 0.0
        %1841 = vmatprep.mubr.f32.mxu0 0.0
        %1842 = vmatmul.mubr.f32.gmra.mxu0 %v1753
        %v1843 = vpop.f32.mrf.mxu0
        %v1844 = vadd.f32 %v1775, %v1843
        %v1845 = vpop.f32.mrf.mxu0
        %1846 = vdwg.mxu0
        %v1847 = vadd.f32 %v1639, %v1844
        %1848 = vst.msk [vmem:[%s404] sm:$0xff] %vm412, %v1847
        %s1849 = sand.u32 %s291, 1
        %s1850 = scalar_lea.sflag [#allocation3], %s1849
        %s1851 = sand.u32 %s291, 1
        %s1852 = smul.addr %s1851, 8
        %s1853 = scalar_lea.vmem [#allocation2], %s1852
        // Predicated region
        $region69: #{tpu_custom_call.1} parent=67 // pred_check
          %p1854 = pneg %p301
        $region70: #{tpu_custom_call.1} parent=67 // pred_check_branch
          %1856 = sbr.rel (%p1854) target = $region72
        $region71: #{tpu_custom_call.1} parent=67 // pred_region
          %s1858 = ssub.s32 128, 128
          %1859 = vsyncadd %s1850, %s1858
          %s1860 = smul.addr %s26, 128
          %s1861 = scalar_lea.hbm %s12, %s1860
          %s1863 = sshll.u32 %s1853, 4
          %s1864 = int_to_ptr.vmem [resolvable:$true] %s1863
          %1866 = dma.vmem_to_hbm [thread:$0]  %s1864, 128, %s1861, %s1850
        $region72: #{tpu_custom_call.1} parent=67 // pred_fallthru
          _
      $region68: #{tpu_custom_call.1} parent=5 // pred_fallthru
        _
      %p1867 = scmp.le.s32.totalorder 2, %s21
      // Predicated region
      $region73: #{tpu_custom_call.1} parent=5 // pred_check
        %p1868 = pneg %p1867
      $region74: #{tpu_custom_call.1} parent=5 // pred_check_branch
        %1870 = sbr.rel (%p1868) target = $region76
      $region75: #{tpu_custom_call.1} parent=5 // pred_region
        %s1871 = ssub.s32 %s21, 2
        // Predicated region
        $region77: #{tpu_custom_call.1} parent=75 // pred_check
          %p1872 = pneg %p307
        $region78: #{tpu_custom_call.1} parent=75 // pred_check_branch
          %1874 = sbr.rel (%p1872) target = $region80
        $region79: #{tpu_custom_call.1} parent=75 // pred_region
          %s1875 = sand.u32 %s292, 1
          %s1876 = scalar_lea.sflag [#allocation3], %s1875
          %s1877 = sand.u32 %s292, 1
          %s1878 = smul.addr %s1877, 8
          %s1879 = scalar_lea.vmem [#allocation2], %s1878
          %1880 = dma.done %s1876, 128
        $region80: #{tpu_custom_call.1} parent=75 // pred_fallthru
          _
      $region76: #{tpu_custom_call.1} parent=5 // pred_fallthru
        _
    $region6: #{tpu_custom_call.1} parent=1 // loop_footer
      %s25 = sadd.s32 1, %s21
    $region7: #{tpu_custom_call.1} parent=1 // loop_footer_branch
      %20 = sbr.rel target = $region3
    $region8: #{tpu_custom_call.1} parent=1 // loop_exit
      _
    %1881 = vsyncpa [#allocation3], 1
    %s1882 = scalar_lea.sflag [#allocation3], 1
    %1883 = vsyncpa %s1882, 1

</llo_original>
